<compile_context>
chip_gen: v5e
topology: v5e:2x2
jax: 0.10.0
libtpu: 0.0.40
codegen_flags: <defaults>
</compile_context>

<pallas_src>
import functools

import jax
import jax.numpy as jnp
from jax import lax
from jax.experimental import pallas as pl
from jax.experimental.pallas import tpu as pltpu


# ----------------------------------------------------------------------------
# helpers
# ----------------------------------------------------------------------------
def _round_up(x, m):
  return -(-x // m) * m


def _shift_w(h, delta):
  """s[:, j, :] = h[:, j + delta, :], zero-filled outside [0, W).

  Implemented as an XLU roll (free slot while the VPU runs the depthwise MACs)
  plus a one-column edge mask, instead of zeros+concatenate copies.
  """
  if delta == 0:
    return h
  w = h.shape[1]
  rolled = pltpu.roll(h, (-delta) % w, axis=1)
  src = lax.broadcasted_iota(jnp.int32, (1, w, 1), 1) + delta
  return jnp.where((src >= 0) & (src < w), rolled, 0.0)


def _pick_tho(h_out, w_kernel, chan, stride, budget=20 * 1024 * 1024):
  """Largest divisor of Ho whose estimated f32 live set fits the VMEM budget."""
  lanes = _round_up(max(chan, 1), 128)
  subl = _round_up(w_kernel, 8)
  best = 1
  for t in range(1, h_out + 1):
    if h_out % t:
      continue
    est = 6 * (stride * t + 2) * subl * lanes * 4   # h + taps + temps + acc
    if est <= budget:
      best = t
  return best


# ----------------------------------------------------------------------------
# kernel
# ----------------------------------------------------------------------------
def _inverted_residual_kernel(*refs, stride, h_total, expand, use_shortcut,
                              odd_w):
  f32 = jnp.float32
  if expand:
    (x_up_ref, x_mid_ref, x_dn_ref, w1_ref, b1_ref,
     wdw_ref, b2_ref, w3_ref, b3_ref, o_ref) = refs
  else:
    (x_up_ref, x_mid_ref, x_dn_ref,
     wdw_ref, b2_ref, w3_ref, b3_ref, o_ref) = refs

  b = pl.program_id(1)
  x_mid = x_mid_ref[0]                               # (th_in, Wk, Cin) bf16
  x_slab = jnp.concatenate([x_up_ref[0], x_mid, x_dn_ref[0]], axis=0)
  h_slab, wk, cin = x_slab.shape                     # h_slab = stride*tho + 2
  th_in = x_mid.shape[0]
  tho = th_in // stride

  # ---- 1x1 expand conv (BN scale pre-folded into w1) + ReLU6 ----------------
  if expand:
    h = jnp.dot(x_slab.reshape(h_slab * wk, cin), w1_ref[...],
                preferred_element_type=f32)
    h = jnp.clip(h + b1_ref[...], 0.0, 6.0)
    hid = h.shape[-1]
    h = h.reshape(h_slab, wk, hid)
  else:
    h = x_slab.astype(f32)
    hid = cin

  # Slab rows outside the image are the depthwise conv's zero padding
  # (must be zeroed AFTER the activation, relu6(b1) != 0).
  row0 = b * th_in - 1                               # image row of slab row 0
  rows = lax.broadcasted_iota(jnp.int32, (h_slab, 1, 1), 0) + row0
  h = jnp.where((rows >= 0) & (rows < h_total), h, 0.0)

  # ---- 3x3 depthwise conv (BN scale pre-folded into wdw) + ReLU6 ------------
  if stride == 1:
    wo = wk
    taps = (_shift_w(h, -1), h, _shift_w(h, 1))              # kw = 0, 1, 2
  else:
    # Columns arrive even||odd-permuted (wrapper), so the parity split is an
    # aligned sublane slice; output col j needs input cols 2j-1, 2j, 2j+1.
    wo = wk // 2
    h_even = h[:, :wo, :]
    h_odd = h[:, wo:, :]
    if odd_w:                                        # last odd col is W padding
      cols = lax.broadcasted_iota(jnp.int32, (1, wo, 1), 1)
      h_odd = jnp.where(cols < wo - 1, h_odd, 0.0)
    taps = (_shift_w(h_odd, -1), h_even, h_odd)              # kw = 0, 1, 2

  wdw = wdw_ref[...]                                 # (9, hid) f32
  acc = jnp.zeros((tho, wo, hid), f32)
  for kh in range(3):
    if stride == 1:
      rows_sel = [t[kh:kh + tho] for t in taps]
    else:  # slab rows kh, kh+2, ... via a free major-axis pair split
      q, r = divmod(kh, 2)
      rows_sel = [t.reshape(h_slab // 2, 2, wo, hid)[q:q + tho, r]
                  for t in taps]
    for kw in range(3):
      acc = acc + rows_sel[kw] * wdw[kh * 3 + kw:kh * 3 + kw + 1, :]
  h2 = jnp.clip(acc + b2_ref[...], 0.0, 6.0)

  # ---- 1x1 project conv (BN scale pre-folded into w3), no activation --------
  y = jnp.dot(h2.reshape(tho * wo, hid).astype(jnp.bfloat16), w3_ref[...],
              preferred_element_type=f32)
  y = y + b3_ref[...]
  cout = y.shape[-1]
  y = y.reshape(tho, wo, cout)

  if use_shortcut:                                   # stride == 1 only
    y = y + x_mid.astype(f32)
  o_ref[0] = y.astype(o_ref.dtype)


# ----------------------------------------------------------------------------
# wrapper (NHWC native channels in HBM; bf16 output)
# ----------------------------------------------------------------------------
def _fold_scales(p, expand):
  """Fold the eval-mode BN scale into the conv weights (f32), keep the biases."""
  f32, bf16 = jnp.float32, jnp.bfloat16
  q = {}
  if expand:
    q['w1'] = (p['w1'].astype(f32) * p['s1'][None, :]).astype(bf16)
    q['b1'] = p['b1'].astype(f32).reshape(1, -1)
  q['wdw'] = (p['wdw'].astype(f32) * p['s2'][None, :]).astype(f32)
  q['b2'] = p['b2'].astype(f32).reshape(1, -1)
  q['w3'] = (p['w3'].astype(f32) * p['s3'][None, :]).astype(bf16)
  q['b3'] = p['b3'].astype(f32).reshape(1, -1)
  return q


def inverted_residual(x, params, *, stride, expand_ratio, block_rows=None):
  """InvertedResidual forward, NHWC in / NHWC out.  x: (N, H, W, Cin)."""
  assert stride in (1, 2), "MobileNet blocks use stride 1 or 2"
  N, H, W, Cin = x.shape
  expand = expand_ratio != 1
  hidden = Cin * expand_ratio
  q = _fold_scales(params, expand)
  Cout = q['w3'].shape[-1]
  use_shortcut = (stride == 1 and Cin == Cout)

  bf16 = jnp.bfloat16
  x = x.astype(bf16)

  if stride == 2:
    Hp, Wp = H + (H % 2), W + (W % 2)
    if (Hp, Wp) != (H, W):
      x = jnp.pad(x, ((0, 0), (0, Hp - H), (0, Wp - W), (0, 0)))
    # even||odd column permutation (cheap XLA pass on the small input) so the
    # kernel decimates W with aligned slices and only computes Wo columns.
    x_in = jnp.concatenate([x[:, :, 0::2, :], x[:, :, 1::2, :]], axis=2)
    Wk = Wp
    Wo = Wp // 2
  else:
    Hp, Wk, Wo = H, W, W
    x_in = x
  Ho = (H - 1) // stride + 1

  tho = block_rows if block_rows is not None else _pick_tho(
      Ho, Wk, max(hidden, Cin), stride)
  assert Ho % tho == 0
  th_in = stride * tho
  nb = Ho // tho

  # weight / bias operands (BN scales already folded in)
  w2d = lambda n, b: (0, 0)
  if expand:
    wargs = [q['w1'], q['b1'], q['wdw'], q['b2'], q['w3'], q['b3']]
  else:
    wargs = [q['wdw'], q['b2'], q['w3'], q['b3']]
  wspecs = [pl.BlockSpec(a.shape, w2d) for a in wargs]

  in_specs = [
      # 1-row halo above the block (clamped; masked in-kernel at the border)
      pl.BlockSpec((1, 1, Wk, Cin),
                   lambda n, b: (n, jnp.maximum(b * th_in - 1, 0), 0, 0)),
      # main input rows for this output row block
      pl.BlockSpec((1, th_in, Wk, Cin), lambda n, b: (n, b, 0, 0)),
      # 1-row halo below the block
      pl.BlockSpec((1, 1, Wk, Cin),
                   lambda n, b: (n, jnp.minimum((b + 1) * th_in, Hp - 1), 0, 0)),
  ] + wspecs
  out_spec = pl.BlockSpec((1, tho, Wo, Cout), lambda n, b: (n, b, 0, 0))

  flops = ((2 * N * Hp * Wk * Cin * hidden) if expand else 0) \
      + 2 * N * Ho * Wo * 9 * hidden + 2 * N * Ho * Wo * hidden * Cout
  bytes_accessed = int(
      x_in.size * x_in.dtype.itemsize
      + sum(a.size * a.dtype.itemsize for a in wargs)
      + N * Ho * Wo * Cout * 2)

  kernel = functools.partial(
      _inverted_residual_kernel, stride=stride, h_total=H, expand=expand,
      use_shortcut=use_shortcut, odd_w=(stride == 2 and W % 2 == 1))

  out = pl.pallas_call(
      kernel,
      out_shape=jax.ShapeDtypeStruct((N, Ho, Wo, Cout), bf16),
      grid=(N, nb),
      in_specs=in_specs,
      out_specs=out_spec,
      compiler_params=pltpu.CompilerParams(
          dimension_semantics=("parallel", "parallel"),
          vmem_limit_bytes=48 * 1024 * 1024),
      cost_estimate=pl.CostEstimate(
          flops=int(flops), transcendentals=0, bytes_accessed=bytes_accessed),
  )(x_in, x_in, x_in, *wargs)
  return out


def inverted_residual_nchw(x_nchw, params, *, stride, expand_ratio):
  """PyTorch-parity adapter (NCHW in / out). Prefer the NHWC entry point."""
  y = inverted_residual(jnp.transpose(x_nchw, (0, 2, 3, 1)), params,
                        stride=stride, expand_ratio=expand_ratio)
  return jnp.transpose(y, (0, 3, 1, 2))


# ----------------------------------------------------------------------------
# parameters (eval-mode BN) and pure-JAX reference
# ----------------------------------------------------------------------------
def _fold_bn(gamma, beta, mean, var, eps=1e-5):
  scale = gamma / jnp.sqrt(var + eps)
  return scale, beta - mean * scale


def build_params(key, in_channel, out_channel, expand_ratio):
  hidden = in_channel * expand_ratio
  ks = jax.random.split(key, 12)
  u = lambda k, s: jax.random.uniform(k, s, jnp.float32, 0.5, 1.5)
  n = lambda k, s: jax.random.normal(k, s, jnp.float32) * 0.1
  p = {}
  if expand_ratio != 1:
    p['w1'] = n(ks[0], (in_channel, hidden))
    p['s1'], p['b1'] = _fold_bn(u(ks[1], (hidden,)), n(ks[2], (hidden,)),
                                n(ks[3], (hidden,)), u(ks[4], (hidden,)))
  p['wdw'] = n(ks[5], (9, hidden))
  p['s2'], p['b2'] = _fold_bn(u(ks[6], (hidden,)), n(ks[7], (hidden,)),
                              n(ks[8], (hidden,)), u(ks[9], (hidden,)))
  p['w3'] = n(ks[10], (hidden, out_channel))
  p['s3'], p['b3'] = _fold_bn(u(ks[11], (out_channel,)),
                              jnp.zeros((out_channel,), jnp.float32),
                              jnp.zeros((out_channel,), jnp.float32),
                              jnp.ones((out_channel,), jnp.float32))
  return p


def _reference(x, params, *, stride, expand_ratio):
  """Pure-JAX NHWC reference (same folded bf16 operands, f32 accumulation)."""
  f32 = jnp.float32
  expand = expand_ratio != 1
  q = _fold_scales(params, expand)
  N, H, W, Cin = x.shape
  Cout = q['w3'].shape[-1]
  x = x.astype(jnp.bfloat16)
  if expand:
    h = jnp.einsum('nhwc,cd->nhwd', x, q['w1'], preferred_element_type=f32)
    h = jnp.clip(h + q['b1'][0], 0.0, 6.0)
  else:
    h = x.astype(f32)
  hid = h.shape[-1]
  Ho = (H - 1) // stride + 1
  Wo = (W - 1) // stride + 1
  hpad = jnp.pad(h, ((0, 0), (1, 1), (1, 1), (0, 0)))
  dw = q['wdw']
  acc = jnp.zeros((N, Ho, Wo, hid), f32)
  for kh in range(3):
    for kw in range(3):
      patch = hpad[:, kh:kh + stride * (Ho - 1) + 1:stride,
                   kw:kw + stride * (Wo - 1) + 1:stride, :]
      acc = acc + patch * dw[kh * 3 + kw]
  h2 = jnp.clip(acc + q['b2'][0], 0.0, 6.0)
  y = jnp.einsum('nhwc,cd->nhwd', h2.astype(jnp.bfloat16), q['w3'],
                 preferred_element_type=f32)
  y = y + q['b3'][0]
  if stride == 1 and Cin == Cout:
    y = y + x.astype(f32)
  return y


# ----------------------------------------------------------------------------
if __name__ == "__main__":
  key = jax.random.PRNGKey(0)
  kx1, kx2, kx3, kp1, kp2, kp3 = jax.random.split(key, 6)

  def _check(x, params, stride, er, expect_shape, block_rows=None):
    out = jax.block_until_ready(
        inverted_residual(x, params, stride=stride, expand_ratio=er,
                          block_rows=block_rows))
    ref = _reference(x, params, stride=stride, expand_ratio=er)
    assert out.shape == expect_shape, (out.shape, expect_shape)
    diff = jnp.max(jnp.abs(out.astype(jnp.float32) - ref))
    assert jnp.allclose(out.astype(jnp.float32), ref,
                        rtol=2.5e-2, atol=2.5e-2), float(diff)

  N, H, W = 2, 16, 16

  # 1) in=4, out=4, stride=1, expand=2 -> expand path + residual shortcut
  #    (block_rows=8 forces nb=2 to exercise the multi-block halo path)
  x1 = jax.random.normal(kx1, (N, H, W, 4), jnp.float32).astype(jnp.bfloat16)
  p1 = build_params(kp1, 4, 4, 2)
  _check(x1, p1, 1, 2, (N, H, W, 4), block_rows=8)

  # 2) in=4, out=8, stride=2, expand=2 -> downsampling, no shortcut
  x2 = jax.random.normal(kx2, (N, H, W, 4), jnp.float32).astype(jnp.bfloat16)
  p2 = build_params(kp2, 4, 8, 2)
  _check(x2, p2, 2, 2, (N, H // 2, W // 2, 8))

  # 3) in=8, out=8, stride=1, expand=1 -> no expand conv, shortcut
  x3 = jax.random.normal(kx3, (N, H, W, 8), jnp.float32).astype(jnp.bfloat16)
  p3 = build_params(kp3, 8, 8, 1)
  _check(x3, p3, 1, 1, (N, H, W, 8))

  print("KERNEL_OK")
</pallas_src>

<mosaic_0001>
module attributes {stable_mosaic.version = 11 : i64} {
  func.func @_inverted_residual_kernel(%arg0: i32, %arg1: i32, %arg2: memref<1x1x16x4xbf16, #tpu.memory_space<vmem>>, %arg3: memref<1x8x16x4xbf16, #tpu.memory_space<vmem>>, %arg4: memref<1x1x16x4xbf16, #tpu.memory_space<vmem>>, %arg5: memref<4x8xbf16, #tpu.memory_space<vmem>>, %arg6: memref<1x8xf32, #tpu.memory_space<vmem>>, %arg7: memref<9x8xf32, #tpu.memory_space<vmem>>, %arg8: memref<1x8xf32, #tpu.memory_space<vmem>>, %arg9: memref<8x4xbf16, #tpu.memory_space<vmem>>, %arg10: memref<1x4xf32, #tpu.memory_space<vmem>>, %arg11: memref<1x8x16x4xbf16, #tpu.memory_space<vmem>>) attributes {dimension_semantics = [#tpu.dimension_semantics<parallel>, #tpu.dimension_semantics<parallel>], iteration_bounds = array<i64: 2, 2>, scalar_prefetch = 0 : i64, scratch_operands = 0 : i64, tpu.core_type = #tpu.core_type<tc>, window_params = [{transform_indices = @transform_0, window_bounds = array<i64: 1, 1, 16, 4>}, {transform_indices = @transform_1, window_bounds = array<i64: 1, 8, 16, 4>}, {transform_indices = @transform_2, window_bounds = array<i64: 1, 1, 16, 4>}, {pipeline_mode = #tpu.pipeline_mode<synchronous>, transform_indices = @transform_3, window_bounds = array<i64: 4, 8>}, {pipeline_mode = #tpu.pipeline_mode<synchronous>, transform_indices = @transform_4, window_bounds = array<i64: 1, 8>}, {pipeline_mode = #tpu.pipeline_mode<synchronous>, transform_indices = @transform_5, window_bounds = array<i64: 9, 8>}, {pipeline_mode = #tpu.pipeline_mode<synchronous>, transform_indices = @transform_6, window_bounds = array<i64: 1, 8>}, {pipeline_mode = #tpu.pipeline_mode<synchronous>, transform_indices = @transform_7, window_bounds = array<i64: 8, 4>}, {pipeline_mode = #tpu.pipeline_mode<synchronous>, transform_indices = @transform_8, window_bounds = array<i64: 1, 4>}, {transform_indices = @transform_9, window_bounds = array<i64: 1, 8, 16, 4>}]} {
    %c0 = arith.constant 0 : index
    %c0_0 = arith.constant 0 : index
    %c0_1 = arith.constant 0 : index
    %c0_2 = arith.constant 0 : index
    %0 = vector.load %arg3[%c0, %c0_0, %c0_1, %c0_2] : memref<1x8x16x4xbf16, #tpu.memory_space<vmem>>, vector<1x8x16x4xbf16>
    %1 = vector.shape_cast %0 : vector<1x8x16x4xbf16> to vector<8x16x4xbf16>
    %c0_3 = arith.constant 0 : index
    %c0_4 = arith.constant 0 : index
    %c0_5 = arith.constant 0 : index
    %c0_6 = arith.constant 0 : index
    %2 = vector.load %arg2[%c0_3, %c0_4, %c0_5, %c0_6] : memref<1x1x16x4xbf16, #tpu.memory_space<vmem>>, vector<1x1x16x4xbf16>
    %3 = vector.shape_cast %2 : vector<1x1x16x4xbf16> to vector<1x16x4xbf16>
    %c0_7 = arith.constant 0 : index
    %c0_8 = arith.constant 0 : index
    %c0_9 = arith.constant 0 : index
    %c0_10 = arith.constant 0 : index
    %4 = vector.load %arg4[%c0_7, %c0_8, %c0_9, %c0_10] : memref<1x1x16x4xbf16, #tpu.memory_space<vmem>>, vector<1x1x16x4xbf16>
    %5 = vector.shape_cast %4 : vector<1x1x16x4xbf16> to vector<1x16x4xbf16>
    %6 = tpu.concatenate %3, %1, %5 in 0 : vector<1x16x4xbf16>, vector<8x16x4xbf16>, vector<1x16x4xbf16> -> vector<10x16x4xbf16>
    %7 = vector.shape_cast %6 : vector<10x16x4xbf16> to vector<160x4xbf16>
    %c0_11 = arith.constant 0 : index
    %c0_12 = arith.constant 0 : index
    %8 = vector.load %arg5[%c0_11, %c0_12] : memref<4x8xbf16, #tpu.memory_space<vmem>>, vector<4x8xbf16>
    %cst = arith.constant dense<0.000000e+00> : vector<160x8xf32>
    %9 = tpu.matmul %7, %8, %cst {dimension_numbers = #tpu.dot_dimension_numbers<[1], [0], [0], [1], [0, 0, 1, 1], [], []>} : vector<160x4xbf16>, vector<4x8xbf16>, vector<160x8xf32> -> vector<160x8xf32>
    %c0_13 = arith.constant 0 : index
    %c0_14 = arith.constant 0 : index
    %10 = vector.load %arg6[%c0_13, %c0_14] : memref<1x8xf32, #tpu.memory_space<vmem>>, vector<1x8xf32>
    %11 = vector.broadcast %10 : vector<1x8xf32> to vector<160x8xf32>
    %12 = arith.addf %9, %11 : vector<160x8xf32>
    %cst_15 = arith.constant 0.000000e+00 : f32
    %cst_16 = arith.constant 6.000000e+00 : f32
    %13 = vector.broadcast %cst_15 : f32 to vector<160x8xf32>
    %14 = arith.maximumf %13, %12 : vector<160x8xf32>
    %15 = vector.broadcast %cst_16 : f32 to vector<160x8xf32>
    %16 = arith.minimumf %15, %14 : vector<160x8xf32>
    %17 = vector.shape_cast %16 : vector<160x8xf32> to vector<10x16x8xf32>
    %c8_i32 = arith.constant 8 : i32
    %18 = arith.muli %arg1, %c8_i32 : i32
    %c1_i32 = arith.constant 1 : i32
    %19 = arith.subi %18, %c1_i32 : i32
    %20 = tpu.iota {dimensions = array<i32: 0>} : vector<10x1x1xi32>
    %21 = vector.broadcast %19 : i32 to vector<10x1x1xi32>
    %22 = arith.addi %20, %21 : vector<10x1x1xi32>
    %c0_i32 = arith.constant 0 : i32
    %23 = vector.broadcast %c0_i32 : i32 to vector<10x1x1xi32>
    %24 = arith.cmpi sge, %22, %23 : vector<10x1x1xi32>
    %c16_i32 = arith.constant 16 : i32
    %25 = vector.broadcast %c16_i32 : i32 to vector<10x1x1xi32>
    %26 = arith.cmpi slt, %22, %25 : vector<10x1x1xi32>
    %27 = arith.andi %24, %26 : vector<10x1x1xi1>
    %cst_17 = arith.constant 0.000000e+00 : f32
    %28 = vector.shape_cast %27 : vector<10x1x1xi1> to vector<10x1x1xi1>
    %29 = vector.broadcast %28 : vector<10x1x1xi1> to vector<10x16x8xi1>
    %30 = vector.broadcast %cst_17 : f32 to vector<10x16x8xf32>
    %31 = arith.select %29, %17, %30 : vector<10x16x8xi1>, vector<10x16x8xf32>
    %c1_i32_18 = arith.constant 1 : i32
    %32 = tpu.dynamic_rotate %31 by %c1_i32_18 dim 1 : vector<10x16x8xf32>, i32 -> vector<10x16x8xf32>
    %33 = tpu.iota {dimensions = array<i32: 1>} : vector<1x16x1xi32>
    %c-1_i32 = arith.constant -1 : i32
    %34 = vector.broadcast %c-1_i32 : i32 to vector<1x16x1xi32>
    %35 = arith.addi %33, %34 : vector<1x16x1xi32>
    %c0_i32_19 = arith.constant 0 : i32
    %36 = vector.broadcast %c0_i32_19 : i32 to vector<1x16x1xi32>
    %37 = arith.cmpi sge, %35, %36 : vector<1x16x1xi32>
    %c16_i32_20 = arith.constant 16 : i32
    %38 = vector.broadcast %c16_i32_20 : i32 to vector<1x16x1xi32>
    %39 = arith.cmpi slt, %35, %38 : vector<1x16x1xi32>
    %40 = arith.andi %37, %39 : vector<1x16x1xi1>
    %cst_21 = arith.constant 0.000000e+00 : f32
    %41 = vector.shape_cast %40 : vector<1x16x1xi1> to vector<1x16x1xi1>
    %42 = vector.broadcast %41 : vector<1x16x1xi1> to vector<10x16x8xi1>
    %43 = vector.broadcast %cst_21 : f32 to vector<10x16x8xf32>
    %44 = arith.select %42, %32, %43 : vector<10x16x8xi1>, vector<10x16x8xf32>
    %c15_i32 = arith.constant 15 : i32
    %45 = tpu.dynamic_rotate %31 by %c15_i32 dim 1 : vector<10x16x8xf32>, i32 -> vector<10x16x8xf32>
    %46 = tpu.iota {dimensions = array<i32: 1>} : vector<1x16x1xi32>
    %c1_i32_22 = arith.constant 1 : i32
    %47 = vector.broadcast %c1_i32_22 : i32 to vector<1x16x1xi32>
    %48 = arith.addi %46, %47 : vector<1x16x1xi32>
    %c0_i32_23 = arith.constant 0 : i32
    %49 = vector.broadcast %c0_i32_23 : i32 to vector<1x16x1xi32>
    %50 = arith.cmpi sge, %48, %49 : vector<1x16x1xi32>
    %c16_i32_24 = arith.constant 16 : i32
    %51 = vector.broadcast %c16_i32_24 : i32 to vector<1x16x1xi32>
    %52 = arith.cmpi slt, %48, %51 : vector<1x16x1xi32>
    %53 = arith.andi %50, %52 : vector<1x16x1xi1>
    %cst_25 = arith.constant 0.000000e+00 : f32
    %54 = vector.shape_cast %53 : vector<1x16x1xi1> to vector<1x16x1xi1>
    %55 = vector.broadcast %54 : vector<1x16x1xi1> to vector<10x16x8xi1>
    %56 = vector.broadcast %cst_25 : f32 to vector<10x16x8xf32>
    %57 = arith.select %55, %45, %56 : vector<10x16x8xi1>, vector<10x16x8xf32>
    %c0_26 = arith.constant 0 : index
    %c0_27 = arith.constant 0 : index
    %58 = vector.load %arg7[%c0_26, %c0_27] : memref<9x8xf32, #tpu.memory_space<vmem>>, vector<9x8xf32>
    %cst_28 = arith.constant 0.000000e+00 : f32
    %59 = vector.broadcast %cst_28 : f32 to vector<8x16x8xf32>
    %60 = vector.extract_strided_slice %44 {offsets = [0, 0, 0], sizes = [8, 16, 8], strides = [1, 1, 1]} : vector<10x16x8xf32> to vector<8x16x8xf32>
    %61 = vector.extract_strided_slice %31 {offsets = [0, 0, 0], sizes = [8, 16, 8], strides = [1, 1, 1]} : vector<10x16x8xf32> to vector<8x16x8xf32>
    %62 = vector.extract_strided_slice %57 {offsets = [0, 0, 0], sizes = [8, 16, 8], strides = [1, 1, 1]} : vector<10x16x8xf32> to vector<8x16x8xf32>
    %63 = vector.extract_strided_slice %58 {offsets = [0, 0], sizes = [1, 8], strides = [1, 1]} : vector<9x8xf32> to vector<1x8xf32>
    %64 = vector.shape_cast %63 : vector<1x8xf32> to vector<1x1x8xf32>
    %65 = vector.broadcast %64 : vector<1x1x8xf32> to vector<8x16x8xf32>
    %66 = arith.mulf %60, %65 : vector<8x16x8xf32>
    %67 = arith.addf %59, %66 : vector<8x16x8xf32>
    %68 = vector.extract_strided_slice %58 {offsets = [1, 0], sizes = [1, 8], strides = [1, 1]} : vector<9x8xf32> to vector<1x8xf32>
    %69 = vector.shape_cast %68 : vector<1x8xf32> to vector<1x1x8xf32>
    %70 = vector.broadcast %69 : vector<1x1x8xf32> to vector<8x16x8xf32>
    %71 = arith.mulf %61, %70 : vector<8x16x8xf32>
    %72 = arith.addf %67, %71 : vector<8x16x8xf32>
    %73 = vector.extract_strided_slice %58 {offsets = [2, 0], sizes = [1, 8], strides = [1, 1]} : vector<9x8xf32> to vector<1x8xf32>
    %74 = vector.shape_cast %73 : vector<1x8xf32> to vector<1x1x8xf32>
    %75 = vector.broadcast %74 : vector<1x1x8xf32> to vector<8x16x8xf32>
    %76 = arith.mulf %62, %75 : vector<8x16x8xf32>
    %77 = arith.addf %72, %76 : vector<8x16x8xf32>
    %78 = vector.extract_strided_slice %44 {offsets = [1, 0, 0], sizes = [8, 16, 8], strides = [1, 1, 1]} : vector<10x16x8xf32> to vector<8x16x8xf32>
    %79 = vector.extract_strided_slice %31 {offsets = [1, 0, 0], sizes = [8, 16, 8], strides = [1, 1, 1]} : vector<10x16x8xf32> to vector<8x16x8xf32>
    %80 = vector.extract_strided_slice %57 {offsets = [1, 0, 0], sizes = [8, 16, 8], strides = [1, 1, 1]} : vector<10x16x8xf32> to vector<8x16x8xf32>
    %81 = vector.extract_strided_slice %58 {offsets = [3, 0], sizes = [1, 8], strides = [1, 1]} : vector<9x8xf32> to vector<1x8xf32>
    %82 = vector.shape_cast %81 : vector<1x8xf32> to vector<1x1x8xf32>
    %83 = vector.broadcast %82 : vector<1x1x8xf32> to vector<8x16x8xf32>
    %84 = arith.mulf %78, %83 : vector<8x16x8xf32>
    %85 = arith.addf %77, %84 : vector<8x16x8xf32>
    %86 = vector.extract_strided_slice %58 {offsets = [4, 0], sizes = [1, 8], strides = [1, 1]} : vector<9x8xf32> to vector<1x8xf32>
    %87 = vector.shape_cast %86 : vector<1x8xf32> to vector<1x1x8xf32>
    %88 = vector.broadcast %87 : vector<1x1x8xf32> to vector<8x16x8xf32>
    %89 = arith.mulf %79, %88 : vector<8x16x8xf32>
    %90 = arith.addf %85, %89 : vector<8x16x8xf32>
    %91 = vector.extract_strided_slice %58 {offsets = [5, 0], sizes = [1, 8], strides = [1, 1]} : vector<9x8xf32> to vector<1x8xf32>
    %92 = vector.shape_cast %91 : vector<1x8xf32> to vector<1x1x8xf32>
    %93 = vector.broadcast %92 : vector<1x1x8xf32> to vector<8x16x8xf32>
    %94 = arith.mulf %80, %93 : vector<8x16x8xf32>
    %95 = arith.addf %90, %94 : vector<8x16x8xf32>
    %96 = vector.extract_strided_slice %44 {offsets = [2, 0, 0], sizes = [8, 16, 8], strides = [1, 1, 1]} : vector<10x16x8xf32> to vector<8x16x8xf32>
    %97 = vector.extract_strided_slice %31 {offsets = [2, 0, 0], sizes = [8, 16, 8], strides = [1, 1, 1]} : vector<10x16x8xf32> to vector<8x16x8xf32>
    %98 = vector.extract_strided_slice %57 {offsets = [2, 0, 0], sizes = [8, 16, 8], strides = [1, 1, 1]} : vector<10x16x8xf32> to vector<8x16x8xf32>
    %99 = vector.extract_strided_slice %58 {offsets = [6, 0], sizes = [1, 8], strides = [1, 1]} : vector<9x8xf32> to vector<1x8xf32>
    %100 = vector.shape_cast %99 : vector<1x8xf32> to vector<1x1x8xf32>
    %101 = vector.broadcast %100 : vector<1x1x8xf32> to vector<8x16x8xf32>
    %102 = arith.mulf %96, %101 : vector<8x16x8xf32>
    %103 = arith.addf %95, %102 : vector<8x16x8xf32>
    %104 = vector.extract_strided_slice %58 {offsets = [7, 0], sizes = [1, 8], strides = [1, 1]} : vector<9x8xf32> to vector<1x8xf32>
    %105 = vector.shape_cast %104 : vector<1x8xf32> to vector<1x1x8xf32>
    %106 = vector.broadcast %105 : vector<1x1x8xf32> to vector<8x16x8xf32>
    %107 = arith.mulf %97, %106 : vector<8x16x8xf32>
    %108 = arith.addf %103, %107 : vector<8x16x8xf32>
    %109 = vector.extract_strided_slice %58 {offsets = [8, 0], sizes = [1, 8], strides = [1, 1]} : vector<9x8xf32> to vector<1x8xf32>
    %110 = vector.shape_cast %109 : vector<1x8xf32> to vector<1x1x8xf32>
    %111 = vector.broadcast %110 : vector<1x1x8xf32> to vector<8x16x8xf32>
    %112 = arith.mulf %98, %111 : vector<8x16x8xf32>
    %113 = arith.addf %108, %112 : vector<8x16x8xf32>
    %c0_29 = arith.constant 0 : index
    %c0_30 = arith.constant 0 : index
    %114 = vector.load %arg8[%c0_29, %c0_30] : memref<1x8xf32, #tpu.memory_space<vmem>>, vector<1x8xf32>
    %115 = vector.shape_cast %114 : vector<1x8xf32> to vector<1x1x8xf32>
    %116 = vector.broadcast %115 : vector<1x1x8xf32> to vector<8x16x8xf32>
    %117 = arith.addf %113, %116 : vector<8x16x8xf32>
    %cst_31 = arith.constant 0.000000e+00 : f32
    %cst_32 = arith.constant 6.000000e+00 : f32
    %118 = vector.broadcast %cst_31 : f32 to vector<8x16x8xf32>
    %119 = arith.maximumf %118, %117 : vector<8x16x8xf32>
    %120 = vector.broadcast %cst_32 : f32 to vector<8x16x8xf32>
    %121 = arith.minimumf %120, %119 : vector<8x16x8xf32>
    %122 = vector.shape_cast %121 : vector<8x16x8xf32> to vector<128x8xf32>
    %123 = arith.truncf %122 : vector<128x8xf32> to vector<128x8xbf16>
    %c0_33 = arith.constant 0 : index
    %c0_34 = arith.constant 0 : index
    %124 = vector.load %arg9[%c0_33, %c0_34] : memref<8x4xbf16, #tpu.memory_space<vmem>>, vector<8x4xbf16>
    %cst_35 = arith.constant dense<0.000000e+00> : vector<128x4xf32>
    %125 = tpu.matmul %123, %124, %cst_35 {dimension_numbers = #tpu.dot_dimension_numbers<[1], [0], [0], [1], [0, 0, 1, 1], [], []>} : vector<128x8xbf16>, vector<8x4xbf16>, vector<128x4xf32> -> vector<128x4xf32>
    %c0_36 = arith.constant 0 : index
    %c0_37 = arith.constant 0 : index
    %126 = vector.load %arg10[%c0_36, %c0_37] : memref<1x4xf32, #tpu.memory_space<vmem>>, vector<1x4xf32>
    %127 = vector.broadcast %126 : vector<1x4xf32> to vector<128x4xf32>
    %128 = arith.addf %125, %127 : vector<128x4xf32>
    %129 = vector.shape_cast %128 : vector<128x4xf32> to vector<8x16x4xf32>
    %130 = arith.extf %1 : vector<8x16x4xbf16> to vector<8x16x4xf32>
    %131 = arith.addf %129, %130 : vector<8x16x4xf32>
    %132 = arith.truncf %131 : vector<8x16x4xf32> to vector<8x16x4xbf16>
    %c0_38 = arith.constant 0 : index
    %c0_39 = arith.constant 0 : index
    %c0_40 = arith.constant 0 : index
    %c0_41 = arith.constant 0 : index
    %133 = vector.load %arg11[%c0_38, %c0_39, %c0_40, %c0_41] : memref<1x8x16x4xbf16, #tpu.memory_space<vmem>>, vector<1x8x16x4xbf16>
    %134 = vector.shape_cast %133 : vector<1x8x16x4xbf16> to vector<8x16x4xbf16>
    %135 = vector.shape_cast %132 : vector<8x16x4xbf16> to vector<1x8x16x4xbf16>
    tpu.vector_store %arg11[%c0_38, %c0_39, %c0_40, %c0_41], %135 {strides = array<i32>} : memref<1x8x16x4xbf16, #tpu.memory_space<vmem>>, vector<1x8x16x4xbf16>,
    return
  }
  func.func @transform_0(%arg0: i32, %arg1: i32) -> (i32, i32, i32, i32) {
    %c8_i32 = arith.constant 8 : i32
    %0 = arith.muli %arg1, %c8_i32 : i32
    %c1_i32 = arith.constant 1 : i32
    %1 = arith.subi %0, %c1_i32 : i32
    %c0_i32 = arith.constant 0 : i32
    %2 = arith.maxsi %1, %c0_i32 : i32
    %c0_i32_0 = arith.constant 0 : i32
    %c0_i32_1 = arith.constant 0 : i32
    %c0_i32_2 = arith.constant 0 : i32
    return %arg0, %2, %c0_i32_0, %c0_i32_1 : i32, i32, i32, i32
  }
  func.func @transform_1(%arg0: i32, %arg1: i32) -> (i32, i32, i32, i32) {
    %c0_i32 = arith.constant 0 : i32
    %c0_i32_0 = arith.constant 0 : i32
    %c0_i32_1 = arith.constant 0 : i32
    return %arg0, %arg1, %c0_i32, %c0_i32_0 : i32, i32, i32, i32
  }
  func.func @transform_2(%arg0: i32, %arg1: i32) -> (i32, i32, i32, i32) {
    %c1_i32 = arith.constant 1 : i32
    %0 = arith.addi %arg1, %c1_i32 : i32
    %c8_i32 = arith.constant 8 : i32
    %1 = arith.muli %0, %c8_i32 : i32
    %c15_i32 = arith.constant 15 : i32
    %2 = arith.minsi %1, %c15_i32 : i32
    %c0_i32 = arith.constant 0 : i32
    %c0_i32_0 = arith.constant 0 : i32
    %c0_i32_1 = arith.constant 0 : i32
    return %arg0, %2, %c0_i32, %c0_i32_0 : i32, i32, i32, i32
  }
  func.func @transform_3(%arg0: i32, %arg1: i32) -> (i32, i32) {
    %c0_i32 = arith.constant 0 : i32
    %c0_i32_0 = arith.constant 0 : i32
    %c0_i32_1 = arith.constant 0 : i32
    return %c0_i32, %c0_i32_0 : i32, i32
  }
  func.func @transform_4(%arg0: i32, %arg1: i32) -> (i32, i32) {
    %c0_i32 = arith.constant 0 : i32
    %c0_i32_0 = arith.constant 0 : i32
    %c0_i32_1 = arith.constant 0 : i32
    return %c0_i32, %c0_i32_0 : i32, i32
  }
  func.func @transform_5(%arg0: i32, %arg1: i32) -> (i32, i32) {
    %c0_i32 = arith.constant 0 : i32
    %c0_i32_0 = arith.constant 0 : i32
    %c0_i32_1 = arith.constant 0 : i32
    return %c0_i32, %c0_i32_0 : i32, i32
  }
  func.func @transform_6(%arg0: i32, %arg1: i32) -> (i32, i32) {
    %c0_i32 = arith.constant 0 : i32
    %c0_i32_0 = arith.constant 0 : i32
    %c0_i32_1 = arith.constant 0 : i32
    return %c0_i32, %c0_i32_0 : i32, i32
  }
  func.func @transform_7(%arg0: i32, %arg1: i32) -> (i32, i32) {
    %c0_i32 = arith.constant 0 : i32
    %c0_i32_0 = arith.constant 0 : i32
    %c0_i32_1 = arith.constant 0 : i32
    return %c0_i32, %c0_i32_0 : i32, i32
  }
  func.func @transform_8(%arg0: i32, %arg1: i32) -> (i32, i32) {
    %c0_i32 = arith.constant 0 : i32
    %c0_i32_0 = arith.constant 0 : i32
    %c0_i32_1 = arith.constant 0 : i32
    return %c0_i32, %c0_i32_0 : i32, i32
  }
  func.func @transform_9(%arg0: i32, %arg1: i32) -> (i32, i32, i32, i32) {
    %c0_i32 = arith.constant 0 : i32
    %c0_i32_0 = arith.constant 0 : i32
    %c0_i32_1 = arith.constant 0 : i32
    return %arg0, %arg1, %c0_i32, %c0_i32_0 : i32, i32, i32, i32
  }
}

</mosaic_0001>

<llo_original>
// kernel: tpu_custom_call.1
$region0: #{tpu_custom_call.1}
  #allocation0 [shape = 'u32[]', space=smem, size = 0x4, offset = 0x4, fixed_abs, tag = 'smem constant byte address 0x4 - core index']
  #allocation1 [shape = 'u32[72,128]{1,0:T(1,128)}', space=vmem, size = 0x9000, scoped, tag = 'internal scratch']
  %s0 = inlined_call_operand.vmem [shape: bf16[2,16,16,4], index: 0, kind: input, shape index: {}]
  %s1 = inlined_call_operand.vmem [shape: bf16[2,16,16,4], index: 1, kind: input, shape index: {}]
  %s2 = inlined_call_operand.vmem [shape: bf16[2,16,16,4], index: 2, kind: input, shape index: {}]
  %s3 = inlined_call_operand.vmem [shape: bf16[4,8], index: 3, kind: input, shape index: {}]
  %s4 = inlined_call_operand.vmem [shape: f32[1,8], index: 4, kind: input, shape index: {}]
  %s5 = inlined_call_operand.vmem [shape: f32[9,8], index: 5, kind: input, shape index: {}]
  %s6 = inlined_call_operand.vmem [shape: f32[1,8], index: 6, kind: input, shape index: {}]
  %s7 = inlined_call_operand.vmem [shape: bf16[8,4], index: 7, kind: input, shape index: {}]
  %s8 = inlined_call_operand.vmem [shape: f32[1,4], index: 8, kind: input, shape index: {}]
  %s9 = inlined_call_operand.vmem [shape: bf16[2,16,16,4], index: 9, kind: output, shape index: {}]
  %s10 = sld [smem:[#allocation0]]
  $region69: #{tpu_custom_call.1} parent=0
    _
  %s12 = ssub.s32 1, %s10
  %s13 = scalar_select 0, %s12, %s10
  loop: start=0, step=1, limit=6
  $region2: #{tpu_custom_call.1} parent=0 // loop_pre_header
    _
  $region3: #{tpu_custom_call.1} parent=0 // loop_header
    %s15 = sphi 0, %s19
    %p16 = scmp.ge.s32.totalorder %s15, 6
    %s22 = sphi 0, %s34
    %s23 = sphi 0, %s30
    %s24 = sphi 0, %s22
    %s25 = sphi 0, %s23
    %s26 = sphi 0, %s24
    %s27 = sphi 0, %s25
    %s47 = sphi 0, %s49
    %s50 = sphi 0, %s47
    %s51 = sphi 0, %s50
    %s67 = sphi 0, %s51
    %s75 = sphi 0, %s77
    %s78 = sphi 0, %s75
    %s79 = sphi 0, %s78
    %s95 = sphi 0, %s79
    %s111 = sphi 0, %s113
    %s114 = sphi 0, %s111
    %s115 = sphi 0, %s114
    %s131 = sphi 0, %s115
    %s135 = sphi 0, %s135
    %s137 = sphi 0, %s135
    %s138 = sphi 0, %s137
    %s152 = sphi 0, %s138
    %s156 = sphi 0, %s156
    %s158 = sphi 0, %s156
    %s159 = sphi 0, %s158
    %s173 = sphi 0, %s159
    %s177 = sphi 0, %s177
    %s179 = sphi 0, %s177
    %s180 = sphi 0, %s179
    %s194 = sphi 0, %s180
    %s198 = sphi 0, %s198
    %s200 = sphi 0, %s198
    %s201 = sphi 0, %s200
    %s215 = sphi 0, %s201
    %s219 = sphi 0, %s219
    %s221 = sphi 0, %s219
    %s222 = sphi 0, %s221
    %s236 = sphi 0, %s222
    %s240 = sphi 0, %s240
    %s242 = sphi 0, %s240
    %s243 = sphi 0, %s242
    %s257 = sphi 0, %s243
    %s265 = sphi 0, %s267
    %s268 = sphi 0, %s265
    %s269 = sphi 0, %s268
    %s285 = sphi 0, %s269
  $region4: #{tpu_custom_call.1} parent=0 // loop_header_branch
    %18 = sbr.rel (%p16) target = $region8
  $region5: #{tpu_custom_call.1} parent=0 // loop_body
    %s20 = ssub.s32 %s15, 1
    %s21 = ssub.s32 %s15, 2
    %s28 = sadd.s32 1, %s23
    %p29 = scmp.ge.s32.totalorder %s28, 2
    %s30 = scalar_select %p29, 0, %s28
    %s31 = sadd.s32 1, %s22
    %s32 = scalar_select %p29, %s31, %s22
    %p33 = scmp.ge.s32.totalorder %s32, 2
    %s34 = scalar_select %p33, 0, %s32
    %s35 = smul.u32 %s23, 8
    %s36 = ssub.s32 %s35, 1
    %p37 = scmp.gt.s32.totalorder %s36, 0
    %s38 = scalar_select %p37, %s36, 0
    %s39 = smul.u32 %s30, 8
    %s40 = ssub.s32 %s39, 1
    %p41 = scmp.gt.s32.totalorder %s40, 0
    %s42 = scalar_select %p41, %s40, 0
    %s43 = ssub.s32 %s22, %s34
    %s44 = ssub.s32 %s38, %s42
    %s45 = sor.u32 %s43, %s44
    %p46 = scmp.eq.s32.totalorder %s45, 0
    %s48 = sadd.s32 %s47, 1
    %s49 = scalar_select %p46, %s47, %s48
    %p52 = pneg %p46
    %p53 = scmp.eq.s32.totalorder %s15, 3
    %p54 = por %p52, %p53
    %p55 = scmp.ne.s32.totalorder %s47, %s50
    %p56 = scmp.eq.s32.totalorder %s15, 0
    %p57 = por %p55, %p56
    %p58 = scmp.ne.s32.totalorder %s47, %s50
    %p59 = scmp.eq.s32.totalorder %s20, 3
    %p60 = por %p58, %p59
    %p61 = scmp.ne.s32.totalorder %s50, %s51
    %p62 = scmp.eq.s32.totalorder %s20, 0
    %p63 = por %p61, %p62
    %p64 = scmp.ne.s32.totalorder %s50, %s51
    %p65 = scmp.eq.s32.totalorder %s21, 3
    %p66 = por %p64, %p65
    %p68 = scmp.ne.s32.totalorder %s51, %s67
    %p69 = scmp.eq.s32.totalorder %s21, 0
    %p70 = por %p68, %p69
    %s71 = ssub.s32 %s22, %s34
    %s72 = ssub.s32 %s23, %s30
    %s73 = sor.u32 %s71, %s72
    %p74 = scmp.eq.s32.totalorder %s73, 0
    %s76 = sadd.s32 %s75, 1
    %s77 = scalar_select %p74, %s75, %s76
    %p80 = pneg %p74
    %p81 = scmp.eq.s32.totalorder %s15, 3
    %p82 = por %p80, %p81
    %p83 = scmp.ne.s32.totalorder %s75, %s78
    %p84 = scmp.eq.s32.totalorder %s15, 0
    %p85 = por %p83, %p84
    %p86 = scmp.ne.s32.totalorder %s75, %s78
    %p87 = scmp.eq.s32.totalorder %s20, 3
    %p88 = por %p86, %p87
    %p89 = scmp.ne.s32.totalorder %s78, %s79
    %p90 = scmp.eq.s32.totalorder %s20, 0
    %p91 = por %p89, %p90
    %p92 = scmp.ne.s32.totalorder %s78, %s79
    %p93 = scmp.eq.s32.totalorder %s21, 3
    %p94 = por %p92, %p93
    %p96 = scmp.ne.s32.totalorder %s79, %s95
    %p97 = scmp.eq.s32.totalorder %s21, 0
    %p98 = por %p96, %p97
    %s99 = sadd.s32 %s23, 1
    %s100 = smul.u32 %s99, 8
    %p101 = scmp.lt.s32.totalorder %s100, 15
    %s102 = scalar_select %p101, %s100, 15
    %s103 = sadd.s32 %s30, 1
    %s104 = smul.u32 %s103, 8
    %p105 = scmp.lt.s32.totalorder %s104, 15
    %s106 = scalar_select %p105, %s104, 15
    %s107 = ssub.s32 %s22, %s34
    %s108 = ssub.s32 %s102, %s106
    %s109 = sor.u32 %s107, %s108
    %p110 = scmp.eq.s32.totalorder %s109, 0
    %s112 = sadd.s32 %s111, 1
    %s113 = scalar_select %p110, %s111, %s112
    %p116 = pneg %p110
    %p117 = scmp.eq.s32.totalorder %s15, 3
    %p118 = por %p116, %p117
    %p119 = scmp.ne.s32.totalorder %s111, %s114
    %p120 = scmp.eq.s32.totalorder %s15, 0
    %p121 = por %p119, %p120
    %p122 = scmp.ne.s32.totalorder %s111, %s114
    %p123 = scmp.eq.s32.totalorder %s20, 3
    %p124 = por %p122, %p123
    %p125 = scmp.ne.s32.totalorder %s114, %s115
    %p126 = scmp.eq.s32.totalorder %s20, 0
    %p127 = por %p125, %p126
    %p128 = scmp.ne.s32.totalorder %s114, %s115
    %p129 = scmp.eq.s32.totalorder %s21, 3
    %p130 = por %p128, %p129
    %p132 = scmp.ne.s32.totalorder %s115, %s131
    %p133 = scmp.eq.s32.totalorder %s21, 0
    %p134 = por %p132, %p133
    %s136 = sadd.s32 %s135, 1
    %p139 = scmp.eq.s32.totalorder %s15, 3
    %p140 = scmp.ne.s32.totalorder %s135, %s137
    %p141 = scmp.eq.s32.totalorder %s15, 0
    %p142 = por %p140, %p141
    %p143 = scmp.ne.s32.totalorder %s135, %s137
    %p144 = scmp.eq.s32.totalorder %s20, 3
    %p145 = por %p143, %p144
    %p146 = scmp.ne.s32.totalorder %s137, %s138
    %p147 = scmp.eq.s32.totalorder %s20, 0
    %p148 = por %p146, %p147
    %p149 = scmp.ne.s32.totalorder %s137, %s138
    %p150 = scmp.eq.s32.totalorder %s21, 3
    %p151 = por %p149, %p150
    %p153 = scmp.ne.s32.totalorder %s138, %s152
    %p154 = scmp.eq.s32.totalorder %s21, 0
    %p155 = por %p153, %p154
    %s157 = sadd.s32 %s156, 1
    %p160 = scmp.eq.s32.totalorder %s15, 3
    %p161 = scmp.ne.s32.totalorder %s156, %s158
    %p162 = scmp.eq.s32.totalorder %s15, 0
    %p163 = por %p161, %p162
    %p164 = scmp.ne.s32.totalorder %s156, %s158
    %p165 = scmp.eq.s32.totalorder %s20, 3
    %p166 = por %p164, %p165
    %p167 = scmp.ne.s32.totalorder %s158, %s159
    %p168 = scmp.eq.s32.totalorder %s20, 0
    %p169 = por %p167, %p168
    %p170 = scmp.ne.s32.totalorder %s158, %s159
    %p171 = scmp.eq.s32.totalorder %s21, 3
    %p172 = por %p170, %p171
    %p174 = scmp.ne.s32.totalorder %s159, %s173
    %p175 = scmp.eq.s32.totalorder %s21, 0
    %p176 = por %p174, %p175
    %s178 = sadd.s32 %s177, 1
    %p181 = scmp.eq.s32.totalorder %s15, 3
    %p182 = scmp.ne.s32.totalorder %s177, %s179
    %p183 = scmp.eq.s32.totalorder %s15, 0
    %p184 = por %p182, %p183
    %p185 = scmp.ne.s32.totalorder %s177, %s179
    %p186 = scmp.eq.s32.totalorder %s20, 3
    %p187 = por %p185, %p186
    %p188 = scmp.ne.s32.totalorder %s179, %s180
    %p189 = scmp.eq.s32.totalorder %s20, 0
    %p190 = por %p188, %p189
    %p191 = scmp.ne.s32.totalorder %s179, %s180
    %p192 = scmp.eq.s32.totalorder %s21, 3
    %p193 = por %p191, %p192
    %p195 = scmp.ne.s32.totalorder %s180, %s194
    %p196 = scmp.eq.s32.totalorder %s21, 0
    %p197 = por %p195, %p196
    %s199 = sadd.s32 %s198, 1
    %p202 = scmp.eq.s32.totalorder %s15, 3
    %p203 = scmp.ne.s32.totalorder %s198, %s200
    %p204 = scmp.eq.s32.totalorder %s15, 0
    %p205 = por %p203, %p204
    %p206 = scmp.ne.s32.totalorder %s198, %s200
    %p207 = scmp.eq.s32.totalorder %s20, 3
    %p208 = por %p206, %p207
    %p209 = scmp.ne.s32.totalorder %s200, %s201
    %p210 = scmp.eq.s32.totalorder %s20, 0
    %p211 = por %p209, %p210
    %p212 = scmp.ne.s32.totalorder %s200, %s201
    %p213 = scmp.eq.s32.totalorder %s21, 3
    %p214 = por %p212, %p213
    %p216 = scmp.ne.s32.totalorder %s201, %s215
    %p217 = scmp.eq.s32.totalorder %s21, 0
    %p218 = por %p216, %p217
    %s220 = sadd.s32 %s219, 1
    %p223 = scmp.eq.s32.totalorder %s15, 3
    %p224 = scmp.ne.s32.totalorder %s219, %s221
    %p225 = scmp.eq.s32.totalorder %s15, 0
    %p226 = por %p224, %p225
    %p227 = scmp.ne.s32.totalorder %s219, %s221
    %p228 = scmp.eq.s32.totalorder %s20, 3
    %p229 = por %p227, %p228
    %p230 = scmp.ne.s32.totalorder %s221, %s222
    %p231 = scmp.eq.s32.totalorder %s20, 0
    %p232 = por %p230, %p231
    %p233 = scmp.ne.s32.totalorder %s221, %s222
    %p234 = scmp.eq.s32.totalorder %s21, 3
    %p235 = por %p233, %p234
    %p237 = scmp.ne.s32.totalorder %s222, %s236
    %p238 = scmp.eq.s32.totalorder %s21, 0
    %p239 = por %p237, %p238
    %s241 = sadd.s32 %s240, 1
    %p244 = scmp.eq.s32.totalorder %s15, 3
    %p245 = scmp.ne.s32.totalorder %s240, %s242
    %p246 = scmp.eq.s32.totalorder %s15, 0
    %p247 = por %p245, %p246
    %p248 = scmp.ne.s32.totalorder %s240, %s242
    %p249 = scmp.eq.s32.totalorder %s20, 3
    %p250 = por %p248, %p249
    %p251 = scmp.ne.s32.totalorder %s242, %s243
    %p252 = scmp.eq.s32.totalorder %s20, 0
    %p253 = por %p251, %p252
    %p254 = scmp.ne.s32.totalorder %s242, %s243
    %p255 = scmp.eq.s32.totalorder %s21, 3
    %p256 = por %p254, %p255
    %p258 = scmp.ne.s32.totalorder %s243, %s257
    %p259 = scmp.eq.s32.totalorder %s21, 0
    %p260 = por %p258, %p259
    %s261 = ssub.s32 %s22, %s34
    %s262 = ssub.s32 %s23, %s30
    %s263 = sor.u32 %s261, %s262
    %p264 = scmp.eq.s32.totalorder %s263, 0
    %s266 = sadd.s32 %s265, 1
    %s267 = scalar_select %p264, %s265, %s266
    %p270 = pneg %p264
    %p271 = scmp.eq.s32.totalorder %s15, 3
    %p272 = por %p270, %p271
    %p273 = scmp.ne.s32.totalorder %s265, %s268
    %p274 = scmp.eq.s32.totalorder %s15, 0
    %p275 = por %p273, %p274
    %p276 = scmp.ne.s32.totalorder %s265, %s268
    %p277 = scmp.eq.s32.totalorder %s20, 3
    %p278 = por %p276, %p277
    %p279 = scmp.ne.s32.totalorder %s268, %s269
    %p280 = scmp.eq.s32.totalorder %s20, 0
    %p281 = por %p279, %p280
    %p282 = scmp.ne.s32.totalorder %s268, %s269
    %p283 = scmp.eq.s32.totalorder %s21, 3
    %p284 = por %p282, %p283
    %p286 = scmp.ne.s32.totalorder %s269, %s285
    %p287 = scmp.eq.s32.totalorder %s21, 0
    %p288 = por %p286, %p287
    %p289 = scmp.le.s32.totalorder 1, %s15
    %p290 = scmp.lt.s32.totalorder %s15, 5
    %p291 = pnand %p289, %p290
    %p292 = pneg %p291
    // Predicated region
    $region9: #{tpu_custom_call.1} parent=5 // pred_check
      _
    $region10: #{tpu_custom_call.1} parent=5 // pred_check_branch
      %294 = sbr.rel (%p291) target = $region12
    $region11: #{tpu_custom_call.1} parent=5 // pred_region
      %s295 = ssub.s32 %s15, 1
      // Predicated region
      $region13: #{tpu_custom_call.1} parent=11 // pred_check
        %p296 = pneg %p148
      $region14: #{tpu_custom_call.1} parent=11 // pred_check_branch
        %298 = sbr.rel (%p296) target = $region16
      $region15: #{tpu_custom_call.1} parent=11 // pred_region
        _
      $region16: #{tpu_custom_call.1} parent=11 // pred_fallthru
        _
      // Predicated region
      $region17: #{tpu_custom_call.1} parent=11 // pred_check
        %p299 = pneg %p169
      $region18: #{tpu_custom_call.1} parent=11 // pred_check_branch
        %301 = sbr.rel (%p299) target = $region20
      $region19: #{tpu_custom_call.1} parent=11 // pred_region
        _
      $region20: #{tpu_custom_call.1} parent=11 // pred_fallthru
        _
      // Predicated region
      $region21: #{tpu_custom_call.1} parent=11 // pred_check
        %p302 = pneg %p190
      $region22: #{tpu_custom_call.1} parent=11 // pred_check_branch
        %304 = sbr.rel (%p302) target = $region24
      $region23: #{tpu_custom_call.1} parent=11 // pred_region
        _
      $region24: #{tpu_custom_call.1} parent=11 // pred_fallthru
        _
      // Predicated region
      $region25: #{tpu_custom_call.1} parent=11 // pred_check
        %p305 = pneg %p211
      $region26: #{tpu_custom_call.1} parent=11 // pred_check_branch
        %307 = sbr.rel (%p305) target = $region28
      $region27: #{tpu_custom_call.1} parent=11 // pred_region
        _
      $region28: #{tpu_custom_call.1} parent=11 // pred_fallthru
        _
      // Predicated region
      $region29: #{tpu_custom_call.1} parent=11 // pred_check
        %p308 = pneg %p232
      $region30: #{tpu_custom_call.1} parent=11 // pred_check_branch
        %310 = sbr.rel (%p308) target = $region32
      $region31: #{tpu_custom_call.1} parent=11 // pred_region
        _
      $region32: #{tpu_custom_call.1} parent=11 // pred_fallthru
        _
      // Predicated region
      $region33: #{tpu_custom_call.1} parent=11 // pred_check
        %p311 = pneg %p253
      $region34: #{tpu_custom_call.1} parent=11 // pred_check_branch
        %313 = sbr.rel (%p311) target = $region36
      $region35: #{tpu_custom_call.1} parent=11 // pred_region
        _
      $region36: #{tpu_custom_call.1} parent=11 // pred_fallthru
        _
    $region12: #{tpu_custom_call.1} parent=5 // pred_fallthru
      _
    %p314 = scmp.lt.s32.totalorder %s15, 4
    // Predicated region
    $region37: #{tpu_custom_call.1} parent=5 // pred_check
      %p315 = pneg %p314
    $region38: #{tpu_custom_call.1} parent=5 // pred_check_branch
      %317 = sbr.rel (%p315) target = $region40
    $region39: #{tpu_custom_call.1} parent=5 // pred_region
      // Predicated region
      $region41: #{tpu_custom_call.1} parent=39 // pred_check
        %p318 = pneg %p57
      $region42: #{tpu_custom_call.1} parent=39 // pred_check_branch
        %320 = sbr.rel (%p318) target = $region44
      $region43: #{tpu_custom_call.1} parent=39 // pred_region
        %s321 = smul.u32 %s23, 8
        %s322 = ssub.s32 %s321, 1
        %p323 = scmp.gt.s32.totalorder %s322, 0
        %s324 = scalar_select %p323, %s322, 0
        %p325 = scmp.lt.s32.totalorder %s22, 1
        %s326 = scalar_select %p325, %s22, 1
        %p327 = scmp.lt.s32.totalorder %s324, 15
        %s328 = scalar_select %p327, %s324, 15
        %s329 = smul.addr %s328, 2
        %s330 = smul.addr %s326, 32
        %s331 = sadd.s32 %s329, %s330
        %s332 = smul.addr %s331, 4
        %s333 = scalar_lea.vmem %s0, %s332
        %s334 = smul.u32 %s23, 8
        %s335 = ssub.s32 %s334, 1
        %p336 = scmp.gt.s32.totalorder %s335, 0
        %s337 = scalar_select %p336, %s335, 0
      $region44: #{tpu_custom_call.1} parent=39 // pred_fallthru
        _
      // Predicated region
      $region45: #{tpu_custom_call.1} parent=39 // pred_check
        %p338 = pneg %p85
      $region46: #{tpu_custom_call.1} parent=39 // pred_check_branch
        %340 = sbr.rel (%p338) target = $region48
      $region47: #{tpu_custom_call.1} parent=39 // pred_region
        %s341 = smul.u32 8, %s23
        %p342 = scmp.lt.s32.totalorder %s22, 1
        %s343 = scalar_select %p342, %s22, 1
        %p344 = scmp.lt.s32.totalorder %s341, 15
        %s345 = scalar_select %p344, %s341, 15
        %s346 = smul.addr %s345, 2
        %s347 = smul.addr %s343, 32
        %s348 = sadd.s32 %s346, %s347
        %s349 = smul.addr %s348, 4
        %s350 = scalar_lea.vmem %s1, %s349
        %s351 = smul.u32 8, %s23
      $region48: #{tpu_custom_call.1} parent=39 // pred_fallthru
        _
      // Predicated region
      $region49: #{tpu_custom_call.1} parent=39 // pred_check
        %p352 = pneg %p121
      $region50: #{tpu_custom_call.1} parent=39 // pred_check_branch
        %354 = sbr.rel (%p352) target = $region52
      $region51: #{tpu_custom_call.1} parent=39 // pred_region
        %s355 = sadd.s32 %s23, 1
        %s356 = smul.u32 %s355, 8
        %p357 = scmp.lt.s32.totalorder %s356, 15
        %s358 = scalar_select %p357, %s356, 15
        %p359 = scmp.lt.s32.totalorder %s22, 1
        %s360 = scalar_select %p359, %s22, 1
        %p361 = scmp.lt.s32.totalorder %s358, 15
        %s362 = scalar_select %p361, %s358, 15
        %s363 = smul.addr %s362, 2
        %s364 = smul.addr %s360, 32
        %s365 = sadd.s32 %s363, %s364
        %s366 = smul.addr %s365, 4
        %s367 = scalar_lea.vmem %s2, %s366
        %s368 = sadd.s32 %s23, 1
        %s369 = smul.u32 %s368, 8
        %p370 = scmp.lt.s32.totalorder %s369, 15
        %s371 = scalar_select %p370, %s369, 15
      $region52: #{tpu_custom_call.1} parent=39 // pred_fallthru
        _
    $region40: #{tpu_custom_call.1} parent=5 // pred_fallthru
      _
    %p372 = scmp.le.s32.totalorder 1, %s15
    %p373 = scmp.lt.s32.totalorder %s15, 5
    %p374 = pnand %p372, %p373
    %p375 = pneg %p374
    // Predicated region
    $region53: #{tpu_custom_call.1} parent=5 // pred_check
      _
    $region54: #{tpu_custom_call.1} parent=5 // pred_check_branch
      %377 = sbr.rel (%p374) target = $region56
    $region55: #{tpu_custom_call.1} parent=5 // pred_region
      %s378 = ssub.s32 %s15, 1
      %s379 = smul.u32 %s25, 8
      %s380 = ssub.s32 %s379, 1
      %p381 = scmp.gt.s32.totalorder %s380, 0
      %s382 = scalar_select %p381, %s380, 0
      %p383 = scmp.lt.s32.totalorder %s24, 1
      %s384 = scalar_select %p383, %s24, 1
      %p385 = scmp.lt.s32.totalorder %s382, 15
      %s386 = scalar_select %p385, %s382, 15
      %s387 = smul.addr %s386, 2
      %s388 = smul.addr %s384, 32
      %s389 = sadd.s32 %s387, %s388
      %s390 = smul.addr %s389, 4
      %s391 = scalar_lea.vmem %s0, %s390
      %p392 = pneg %p63
      %p393 = pneg %p60
      %s394 = smul.u32 8, %s25
      %p395 = scmp.lt.s32.totalorder %s24, 1
      %s396 = scalar_select %p395, %s24, 1
      %p397 = scmp.lt.s32.totalorder %s394, 15
      %s398 = scalar_select %p397, %s394, 15
      %s399 = smul.addr %s398, 2
      %s400 = smul.addr %s396, 32
      %s401 = sadd.s32 %s399, %s400
      %s402 = smul.addr %s401, 4
      %s403 = scalar_lea.vmem %s1, %s402
      %p404 = pneg %p91
      %p405 = pneg %p88
      %s406 = sadd.s32 %s25, 1
      %s407 = smul.u32 %s406, 8
      %p408 = scmp.lt.s32.totalorder %s407, 15
      %s409 = scalar_select %p408, %s407, 15
      %p410 = scmp.lt.s32.totalorder %s24, 1
      %s411 = scalar_select %p410, %s24, 1
      %p412 = scmp.lt.s32.totalorder %s409, 15
      %s413 = scalar_select %p412, %s409, 15
      %s414 = smul.addr %s413, 2
      %s415 = smul.addr %s411, 32
      %s416 = sadd.s32 %s414, %s415
      %s417 = smul.addr %s416, 4
      %s418 = scalar_lea.vmem %s2, %s417
      %p419 = pneg %p127
      %p420 = pneg %p124
      %p421 = pneg %p148
      %p422 = pneg %p145
      %p423 = pneg %p169
      %p424 = pneg %p166
      %p425 = pneg %p190
      %p426 = pneg %p187
      %p427 = pneg %p211
      %p428 = pneg %p208
      %p429 = pneg %p232
      %p430 = pneg %p229
      %p431 = pneg %p253
      %p432 = pneg %p250
      %p433 = pneg %p281
      %p434 = pneg %p278
      %s435 = smul.u32 8, %s25
      %p436 = scmp.lt.s32.totalorder %s24, 1
      %s437 = scalar_select %p436, %s24, 1
      %p438 = scmp.lt.s32.totalorder %s435, 15
      %s439 = scalar_select %p438, %s435, 15
      %s440 = smul.addr %s439, 2
      %s441 = smul.addr %s437, 32
      %s442 = sadd.s32 %s440, %s441
      %s443 = smul.addr %s442, 4
      %s444 = scalar_lea.vmem %s9, %s443
      %s445 = smul.u32 %s25, 8
      %s446 = ssub.s32 %s445, 1
      %p447 = scmp.gt.s32.totalorder %s446, 0
      %s448 = scalar_select %p447, %s446, 0
      %p449 = scmp.lt.s32.totalorder %s24, 1
      %s450 = scalar_select %p449, %s24, 1
      %p451 = scmp.lt.s32.totalorder %s448, 15
      %s452 = scalar_select %p451, %s448, 15
      %s453 = smul.addr %s452, 2
      %s454 = smul.addr %s450, 32
      %s455 = sadd.s32 %s453, %s454
      %s456 = smul.addr %s455, 4
      %s457 = scalar_lea.vmem %s0, %s456
      %s458 = smul.u32 %s25, 8
      %s459 = ssub.s32 %s458, 1
      %p460 = scmp.gt.s32.totalorder %s459, 0
      %s461 = scalar_select %p460, %s459, 0
      %s462 = smul.u32 8, %s25
      %p463 = scmp.lt.s32.totalorder %s24, 1
      %s464 = scalar_select %p463, %s24, 1
      %p465 = scmp.lt.s32.totalorder %s462, 15
      %s466 = scalar_select %p465, %s462, 15
      %s467 = smul.addr %s466, 2
      %s468 = smul.addr %s464, 32
      %s469 = sadd.s32 %s467, %s468
      %s470 = smul.addr %s469, 4
      %s471 = scalar_lea.vmem %s1, %s470
      %s472 = smul.u32 8, %s25
      %s473 = sadd.s32 %s25, 1
      %s474 = smul.u32 %s473, 8
      %p475 = scmp.lt.s32.totalorder %s474, 15
      %s476 = scalar_select %p475, %s474, 15
      %p477 = scmp.lt.s32.totalorder %s24, 1
      %s478 = scalar_select %p477, %s24, 1
      %p479 = scmp.lt.s32.totalorder %s476, 15
      %s480 = scalar_select %p479, %s476, 15
      %s481 = smul.addr %s480, 2
      %s482 = smul.addr %s478, 32
      %s483 = sadd.s32 %s481, %s482
      %s484 = smul.addr %s483, 4
      %s485 = scalar_lea.vmem %s2, %s484
      %s486 = sadd.s32 %s25, 1
      %s487 = smul.u32 %s486, 8
      %p488 = scmp.lt.s32.totalorder %s487, 15
      %s489 = scalar_select %p488, %s487, 15
      %s490 = smul.u32 8, %s25
      %p491 = scmp.lt.s32.totalorder %s24, 1
      %s492 = scalar_select %p491, %s24, 1
      %p493 = scmp.lt.s32.totalorder %s490, 15
      %s494 = scalar_select %p493, %s490, 15
      %s495 = smul.addr %s494, 2
      %s496 = smul.addr %s492, 32
      %s497 = sadd.s32 %s495, %s496
      %s498 = smul.addr %s497, 4
      %s499 = scalar_lea.vmem %s9, %s498
      %s500 = smul.u32 8, %s25
      %v502 = vld [vmem:[%s471] sm:$0xf]
      %v503 = vld [vmem:[%s471 + $0x4] sm:$0xf]
      %v504 = vld [vmem:[%s471 + $0x8] sm:$0xf]
      %v505 = vld [vmem:[%s471 + $0xc] sm:$0xf]
      %v506 = vld [vmem:[%s471 + $0x10] sm:$0xf]
      %v507 = vld [vmem:[%s471 + $0x14] sm:$0xf]
      %v508 = vld [vmem:[%s471 + $0x18] sm:$0xf]
      %v509 = vld [vmem:[%s471 + $0x1c] sm:$0xf]
      %v510 = vld [vmem:[%s471 + $0x20] sm:$0xf]
      %v511 = vld [vmem:[%s471 + $0x24] sm:$0xf]
      %v512 = vld [vmem:[%s471 + $0x28] sm:$0xf]
      %v513 = vld [vmem:[%s471 + $0x2c] sm:$0xf]
      %v514 = vld [vmem:[%s471 + $0x30] sm:$0xf]
      %v515 = vld [vmem:[%s471 + $0x34] sm:$0xf]
      %v516 = vld [vmem:[%s471 + $0x38] sm:$0xf]
      %v517 = vld [vmem:[%s471 + $0x3c] sm:$0xf]
      %v518 = vld [vmem:[%s457] sm:$0xf]
      %v519 = vld [vmem:[%s457 + $0x4] sm:$0xf]
      %v520 = vld [vmem:[%s485] sm:$0xf]
      %v521 = vld [vmem:[%s485 + $0x4] sm:$0xf]
      %v522 = vld [vmem:[%s3] sm:$0x3]
      %v523 = vld [vmem:[%s4] sm:$0x1]
      %v525 = vperm.slane %v523, 0
      %v547 = vunpack.c.l.b16 %v518
      %v548 = vunpack.c.l.b16 %v519
      %v549 = vunpack.c.l.b16 %v502
      %v550 = vunpack.c.l.b16 %v503
      %v551 = vunpack.c.l.b16 %v504
      %v552 = vunpack.c.l.b16 %v505
      %v553 = vunpack.c.l.b16 %v506
      %v554 = vunpack.c.l.b16 %v507
      %v555 = vunpack.c.l.b16 %v508
      %v556 = vunpack.c.l.b16 %v509
      %v557 = vunpack.c.l.b16 %v510
      %v558 = vunpack.c.l.b16 %v511
      %v559 = vunpack.c.l.b16 %v512
      %v560 = vunpack.c.l.b16 %v513
      %v561 = vunpack.c.l.b16 %v514
      %v562 = vunpack.c.l.b16 %v515
      %v563 = vunpack.c.l.b16 %v516
      %v564 = vunpack.c.l.b16 %v517
      %v565 = vunpack.c.l.b16 %v520
      %v566 = vunpack.c.l.b16 %v521
      %v567 = vpack.c.b16 %v548, %v547
      %v568 = vpack.c.b16 %v550, %v549
      %v569 = vpack.c.b16 %v552, %v551
      %v570 = vpack.c.b16 %v554, %v553
      %v571 = vpack.c.b16 %v556, %v555
      %v572 = vpack.c.b16 %v558, %v557
      %v573 = vpack.c.b16 %v560, %v559
      %v574 = vpack.c.b16 %v562, %v561
      %v575 = vpack.c.b16 %v564, %v563
      %v576 = vpack.c.b16 %v566, %v565
      %vm577 = vcmask 31744
      %v579 = vsel %vm577, %v567, 0
      %v582 = vsel %vm577, %v568, 0
      %v585 = vsel %vm577, %v569, 0
      %v588 = vsel %vm577, %v570, 0
      %v591 = vsel %vm577, %v571, 0
      %v594 = vsel %vm577, %v572, 0
      %v597 = vsel %vm577, %v573, 0
      %v600 = vsel %vm577, %v574, 0
      %v603 = vsel %vm577, %v575, 0
      %v606 = vsel %vm577, %v576, 0
      %vm608 = vcmask 1041408
      %v610 = vsel %vm608, %v522, 0
      %612 = vmatpush.bf16.msra.mxu0 0
      %613 = vmatpush.bf16.msra.mxu0 0
      %614 = vmatpush.bf16.msra.mxu0 0
      %615 = vmatpush.bf16.msra.mxu0 0
      %616 = vmatpush.bf16.msra.mxu0 0
      %617 = vmatpush.bf16.msra.mxu0 0
      %618 = vmatpush.bf16.msra.mxu0 0
      %619 = vmatpush.bf16.msra.mxu0 %v610
      %620 = vmatmul.bf16.gmra.mxu0 %v579
      %v621 = vpop.f32.mrf.mxu0
      %v622 = vadd.f32 %v525, %v621
      %v623 = vpop.f32.mrf.mxu0
      %v624 = vadd.f32 %v525, %v623
      %625 = vmatmul.bf16.gmra.mxu0 %v582
      %v626 = vpop.f32.mrf.mxu0
      %v627 = vadd.f32 %v525, %v626
      %v628 = vpop.f32.mrf.mxu0
      %v629 = vadd.f32 %v525, %v628
      %630 = vmatmul.bf16.gmra.mxu0 %v585
      %v631 = vpop.f32.mrf.mxu0
      %v632 = vadd.f32 %v525, %v631
      %v633 = vpop.f32.mrf.mxu0
      %v634 = vadd.f32 %v525, %v633
      %635 = vmatmul.bf16.gmra.mxu0 %v588
      %v636 = vpop.f32.mrf.mxu0
      %v637 = vadd.f32 %v525, %v636
      %v638 = vpop.f32.mrf.mxu0
      %v639 = vadd.f32 %v525, %v638
      %640 = vmatmul.bf16.gmra.mxu0 %v591
      %v641 = vpop.f32.mrf.mxu0
      %v642 = vadd.f32 %v525, %v641
      %v643 = vpop.f32.mrf.mxu0
      %v644 = vadd.f32 %v525, %v643
      %645 = vmatmul.bf16.gmra.mxu0 %v594
      %v646 = vpop.f32.mrf.mxu0
      %v647 = vadd.f32 %v525, %v646
      %v648 = vpop.f32.mrf.mxu0
      %v649 = vadd.f32 %v525, %v648
      %650 = vmatmul.bf16.gmra.mxu0 %v597
      %v651 = vpop.f32.mrf.mxu0
      %v652 = vadd.f32 %v525, %v651
      %v653 = vpop.f32.mrf.mxu0
      %v654 = vadd.f32 %v525, %v653
      %655 = vmatmul.bf16.gmra.mxu0 %v600
      %v656 = vpop.f32.mrf.mxu0
      %v657 = vadd.f32 %v525, %v656
      %v658 = vpop.f32.mrf.mxu0
      %v659 = vadd.f32 %v525, %v658
      %660 = vmatmul.bf16.gmra.mxu0 %v603
      %v661 = vpop.f32.mrf.mxu0
      %v662 = vadd.f32 %v525, %v661
      %v663 = vpop.f32.mrf.mxu0
      %v664 = vadd.f32 %v525, %v663
      %665 = vmatmul.bf16.gmra.mxu0 %v606
      %v666 = vpop.f32.mrf.mxu0
      %v667 = vadd.f32 %v525, %v666
      %v668 = vpop.f32.mrf.mxu0
      %v669 = vadd.f32 %v525, %v668
      %670 = vdwg.mxu0
      %v671 = vmax.f32 %v622, 0.0
      %v672 = vmax.f32 %v624, 0.0
      %v673 = vmax.f32 %v627, 0.0
      %v674 = vmax.f32 %v629, 0.0
      %v675 = vmax.f32 %v632, 0.0
      %v676 = vmax.f32 %v634, 0.0
      %v677 = vmax.f32 %v637, 0.0
      %v678 = vmax.f32 %v639, 0.0
      %v679 = vmax.f32 %v642, 0.0
      %v680 = vmax.f32 %v644, 0.0
      %v681 = vmax.f32 %v647, 0.0
      %v682 = vmax.f32 %v649, 0.0
      %v683 = vmax.f32 %v652, 0.0
      %v684 = vmax.f32 %v654, 0.0
      %v685 = vmax.f32 %v657, 0.0
      %v686 = vmax.f32 %v659, 0.0
      %v687 = vmax.f32 %v662, 0.0
      %v688 = vmax.f32 %v664, 0.0
      %v689 = vmax.f32 %v667, 0.0
      %v690 = vmax.f32 %v669, 0.0
      %v691 = vmin.f32 %v671, 6.0
      %v692 = vmin.f32 %v672, 6.0
      %v693 = vmin.f32 %v673, 6.0
      %v694 = vmin.f32 %v674, 6.0
      %v695 = vmin.f32 %v675, 6.0
      %v696 = vmin.f32 %v676, 6.0
      %v697 = vmin.f32 %v677, 6.0
      %v698 = vmin.f32 %v678, 6.0
      %v699 = vmin.f32 %v679, 6.0
      %v700 = vmin.f32 %v680, 6.0
      %v701 = vmin.f32 %v681, 6.0
      %v702 = vmin.f32 %v682, 6.0
      %v703 = vmin.f32 %v683, 6.0
      %v704 = vmin.f32 %v684, 6.0
      %v705 = vmin.f32 %v685, 6.0
      %v706 = vmin.f32 %v686, 6.0
      %v707 = vmin.f32 %v687, 6.0
      %v708 = vmin.f32 %v688, 6.0
      %v709 = vmin.f32 %v689, 6.0
      %v710 = vmin.f32 %v690, 6.0
      %s711 = smul.u32 %s25, 8
      %s712 = ssub.s32 %s711, 1
      %v713 = vstv %s712
      %v714 = vadd.s32 %v713, 1
      %v715 = vadd.s32 %v713, 2
      %v716 = vadd.s32 %v713, 3
      %v717 = vadd.s32 %v713, 4
      %v718 = vadd.s32 %v713, 5
      %v719 = vadd.s32 %v713, 6
      %v720 = vadd.s32 %v713, 7
      %v721 = vadd.s32 %v713, 8
      %v722 = vadd.s32 %v713, 9
      %vm723 = vcmp.ge.s32.totalorder %v713, 0
      %vm724 = vcmp.ge.s32.totalorder %v714, 0
      %vm725 = vcmp.ge.s32.totalorder %v715, 0
      %vm726 = vcmp.ge.s32.totalorder %v716, 0
      %vm727 = vcmp.ge.s32.totalorder %v717, 0
      %vm728 = vcmp.ge.s32.totalorder %v718, 0
      %vm729 = vcmp.ge.s32.totalorder %v719, 0
      %vm730 = vcmp.ge.s32.totalorder %v720, 0
      %vm731 = vcmp.ge.s32.totalorder %v721, 0
      %vm732 = vcmp.ge.s32.totalorder %v722, 0
      %vm733 = vcmp.lt.s32.totalorder %v713, 16
      %vm734 = vcmp.lt.s32.totalorder %v714, 16
      %vm735 = vcmp.lt.s32.totalorder %v715, 16
      %vm736 = vcmp.lt.s32.totalorder %v716, 16
      %vm737 = vcmp.lt.s32.totalorder %v717, 16
      %vm738 = vcmp.lt.s32.totalorder %v718, 16
      %vm739 = vcmp.lt.s32.totalorder %v719, 16
      %vm740 = vcmp.lt.s32.totalorder %v720, 16
      %vm741 = vcmp.lt.s32.totalorder %v721, 16
      %vm742 = vcmp.lt.s32.totalorder %v722, 16
      %vm743 = vmand %vm723, %vm733
      %vm744 = vmand %vm724, %vm734
      %vm745 = vmand %vm725, %vm735
      %vm746 = vmand %vm726, %vm736
      %vm747 = vmand %vm727, %vm737
      %vm748 = vmand %vm728, %vm738
      %vm749 = vmand %vm729, %vm739
      %vm750 = vmand %vm730, %vm740
      %vm751 = vmand %vm731, %vm741
      %vm752 = vmand %vm732, %vm742
      %v753 = vsel %vm743, 1, 0
      %v754 = vsel %vm744, 1, 0
      %v755 = vsel %vm745, 1, 0
      %v756 = vsel %vm746, 1, 0
      %v757 = vsel %vm747, 1, 0
      %v758 = vsel %vm748, 1, 0
      %v759 = vsel %vm749, 1, 0
      %v760 = vsel %vm750, 1, 0
      %v761 = vsel %vm751, 1, 0
      %v762 = vsel %vm752, 1, 0
      %vm763 = vcmp.eq.s32.totalorder %v753, 1
      %vm764 = vcmp.eq.s32.totalorder %v754, 1
      %vm765 = vcmp.eq.s32.totalorder %v755, 1
      %vm766 = vcmp.eq.s32.totalorder %v756, 1
      %vm767 = vcmp.eq.s32.totalorder %v757, 1
      %vm768 = vcmp.eq.s32.totalorder %v758, 1
      %vm769 = vcmp.eq.s32.totalorder %v759, 1
      %vm770 = vcmp.eq.s32.totalorder %v760, 1
      %vm771 = vcmp.eq.s32.totalorder %v761, 1
      %vm772 = vcmp.eq.s32.totalorder %v762, 1
      %v773 = vsel %vm763, %v691, 0.0
      %v774 = vsel %vm763, %v692, 0.0
      %v775 = vsel %vm764, %v693, 0.0
      %v776 = vsel %vm764, %v694, 0.0
      %v777 = vsel %vm765, %v695, 0.0
      %v778 = vsel %vm765, %v696, 0.0
      %v779 = vsel %vm766, %v697, 0.0
      %v780 = vsel %vm766, %v698, 0.0
      %v781 = vsel %vm767, %v699, 0.0
      %v782 = vsel %vm767, %v700, 0.0
      %v783 = vsel %vm768, %v701, 0.0
      %v784 = vsel %vm768, %v702, 0.0
      %v785 = vsel %vm769, %v703, 0.0
      %v786 = vsel %vm769, %v704, 0.0
      %v787 = vsel %vm770, %v705, 0.0
      %v788 = vsel %vm770, %v706, 0.0
      %v789 = vsel %vm771, %v707, 0.0
      %v790 = vsel %vm771, %v708, 0.0
      %v791 = vsel %vm772, %v709, 0.0
      %v792 = vsel %vm772, %v710, 0.0
      %v793 = vrot.slane %v773, 7
      %v794 = vrot.slane %v775, 7
      %v795 = vrot.slane %v777, 7
      %v796 = vrot.slane %v779, 7
      %v797 = vrot.slane %v781, 7
      %v798 = vrot.slane %v783, 7
      %v799 = vrot.slane %v785, 7
      %v800 = vrot.slane %v787, 7
      %v801 = vrot.slane %v789, 7
      %v802 = vrot.slane %v791, 7
      %v803 = vrot.slane %v774, 7
      %v804 = vrot.slane %v776, 7
      %v805 = vrot.slane %v778, 7
      %v806 = vrot.slane %v780, 7
      %v807 = vrot.slane %v782, 7
      %v808 = vrot.slane %v784, 7
      %v809 = vrot.slane %v786, 7
      %v810 = vrot.slane %v788, 7
      %v811 = vrot.slane %v790, 7
      %v812 = vrot.slane %v792, 7
      %v813 = vlaneseq
      %v814 = vshrl.u32 %v813, 7
      %vm815 = vcmp.lt.s32.totalorder %v814, 1
      %v816 = vsel %vm815, %v793, %v803
      %v817 = vsel %vm815, %v794, %v804
      %v818 = vsel %vm815, %v795, %v805
      %v819 = vsel %vm815, %v796, %v806
      %v820 = vsel %vm815, %v797, %v807
      %v821 = vsel %vm815, %v798, %v808
      %v822 = vsel %vm815, %v799, %v809
      %v823 = vsel %vm815, %v800, %v810
      %v824 = vsel %vm815, %v801, %v811
      %v825 = vsel %vm815, %v802, %v812
      %v826 = vsel %vm815, %v803, %v793
      %v827 = vsel %vm815, %v804, %v794
      %v828 = vsel %vm815, %v805, %v795
      %v829 = vsel %vm815, %v806, %v796
      %v830 = vsel %vm815, %v807, %v797
      %v831 = vsel %vm815, %v808, %v798
      %v832 = vsel %vm815, %v809, %v799
      %v833 = vsel %vm815, %v810, %v800
      %v834 = vsel %vm815, %v811, %v801
      %v835 = vsel %vm815, %v812, %v802
      %v836 = vadd.s32 %v814, 8
      %v837 = vadd.s32 %v814, 4294967295
      %v838 = vadd.s32 %v836, 4294967295
      %vm839 = vcmp.ge.s32.totalorder %v837, 0
      %vm840 = vcmp.ge.s32.totalorder %v838, 0
      %vm841 = vcmp.lt.s32.totalorder %v837, 16
      %vm842 = vcmp.lt.s32.totalorder %v838, 16
      %vm843 = vmand %vm839, %vm841
      %vm844 = vmand %vm840, %vm842
      %v845 = vsel %vm843, 1, 0
      %v846 = vsel %vm844, 1, 0
      %vm847 = vcmp.eq.s32.totalorder %v845, 1
      %vm848 = vcmp.eq.s32.totalorder %v846, 1
      %v849 = vsel %vm847, %v826, 0.0
      %v850 = vsel %vm848, %v816, 0.0
      %v851 = vsel %vm847, %v827, 0.0
      %v852 = vsel %vm848, %v817, 0.0
      %v853 = vsel %vm847, %v828, 0.0
      %v854 = vsel %vm848, %v818, 0.0
      %v855 = vsel %vm847, %v829, 0.0
      %v856 = vsel %vm848, %v819, 0.0
      %v857 = vsel %vm847, %v830, 0.0
      %v858 = vsel %vm848, %v820, 0.0
      %v859 = vsel %vm847, %v831, 0.0
      %v860 = vsel %vm848, %v821, 0.0
      %v861 = vsel %vm847, %v832, 0.0
      %v862 = vsel %vm848, %v822, 0.0
      %v863 = vsel %vm847, %v833, 0.0
      %v864 = vsel %vm848, %v823, 0.0
      %v865 = vsel %vm847, %v834, 0.0
      %v866 = vsel %vm848, %v824, 0.0
      %v867 = vsel %vm847, %v835, 0.0
      %v868 = vsel %vm848, %v825, 0.0
      %v869 = vrot.slane %v773, 1
      %v870 = vrot.slane %v775, 1
      %v871 = vrot.slane %v777, 1
      %v872 = vrot.slane %v779, 1
      %v873 = vrot.slane %v781, 1
      %v874 = vrot.slane %v783, 1
      %v875 = vrot.slane %v785, 1
      %v876 = vrot.slane %v787, 1
      %v877 = vrot.slane %v789, 1
      %v878 = vrot.slane %v791, 1
      %v879 = vrot.slane %v774, 1
      %v880 = vrot.slane %v776, 1
      %v881 = vrot.slane %v778, 1
      %v882 = vrot.slane %v780, 1
      %v883 = vrot.slane %v782, 1
      %v884 = vrot.slane %v784, 1
      %v885 = vrot.slane %v786, 1
      %v886 = vrot.slane %v788, 1
      %v887 = vrot.slane %v790, 1
      %v888 = vrot.slane %v792, 1
      %vm889 = vcmp.lt.s32.totalorder %v814, 7
      %v890 = vsel %vm889, %v869, %v879
      %v891 = vsel %vm889, %v870, %v880
      %v892 = vsel %vm889, %v871, %v881
      %v893 = vsel %vm889, %v872, %v882
      %v894 = vsel %vm889, %v873, %v883
      %v895 = vsel %vm889, %v874, %v884
      %v896 = vsel %vm889, %v875, %v885
      %v897 = vsel %vm889, %v876, %v886
      %v898 = vsel %vm889, %v877, %v887
      %v899 = vsel %vm889, %v878, %v888
      %v900 = vsel %vm889, %v879, %v869
      %v901 = vsel %vm889, %v880, %v870
      %v902 = vsel %vm889, %v881, %v871
      %v903 = vsel %vm889, %v882, %v872
      %v904 = vsel %vm889, %v883, %v873
      %v905 = vsel %vm889, %v884, %v874
      %v906 = vsel %vm889, %v885, %v875
      %v907 = vsel %vm889, %v886, %v876
      %v908 = vsel %vm889, %v887, %v877
      %v909 = vsel %vm889, %v888, %v878
      %v910 = vadd.s32 %v814, 1
      %v911 = vadd.s32 %v836, 1
      %vm912 = vcmp.ge.s32.totalorder %v910, 0
      %vm913 = vcmp.ge.s32.totalorder %v911, 0
      %vm914 = vcmp.lt.s32.totalorder %v910, 16
      %vm915 = vcmp.lt.s32.totalorder %v911, 16
      %vm916 = vmand %vm912, %vm914
      %vm917 = vmand %vm913, %vm915
      %v918 = vsel %vm916, 1, 0
      %v919 = vsel %vm917, 1, 0
      %vm920 = vcmp.eq.s32.totalorder %v918, 1
      %vm921 = vcmp.eq.s32.totalorder %v919, 1
      %v922 = vsel %vm920, %v890, 0.0
      %v923 = vsel %vm921, %v900, 0.0
      %v924 = vsel %vm920, %v891, 0.0
      %v925 = vsel %vm921, %v901, 0.0
      %v926 = vsel %vm920, %v892, 0.0
      %v927 = vsel %vm921, %v902, 0.0
      %v928 = vsel %vm920, %v893, 0.0
      %v929 = vsel %vm921, %v903, 0.0
      %v930 = vsel %vm920, %v894, 0.0
      %v931 = vsel %vm921, %v904, 0.0
      %v932 = vsel %vm920, %v895, 0.0
      %v933 = vsel %vm921, %v905, 0.0
      %v934 = vsel %vm920, %v896, 0.0
      %v935 = vsel %vm921, %v906, 0.0
      %v936 = vsel %vm920, %v897, 0.0
      %v937 = vsel %vm921, %v907, 0.0
      %v938 = vsel %vm920, %v898, 0.0
      %v939 = vsel %vm921, %v908, 0.0
      %v940 = vsel %vm920, %v899, 0.0
      %v941 = vsel %vm921, %v909, 0.0
      %v942 = vld [vmem:[%s5] sm:$0xff]
      %v943 = vld [vmem:[%s5 + $0x8] sm:$0x1]
      %v944 = vperm.slane %v942, 0
      %v945 = vmul.f32 %v849, %v944
      %v946 = vmul.f32 %v850, %v944
      %v947 = vmul.f32 %v851, %v944
      %v948 = vmul.f32 %v852, %v944
      %v949 = vmul.f32 %v853, %v944
      %v950 = vmul.f32 %v854, %v944
      %v951 = vmul.f32 %v855, %v944
      %v952 = vmul.f32 %v856, %v944
      %v953 = vmul.f32 %v857, %v944
      %v954 = vmul.f32 %v858, %v944
      %v955 = vmul.f32 %v859, %v944
      %v956 = vmul.f32 %v860, %v944
      %v957 = vmul.f32 %v861, %v944
      %v958 = vmul.f32 %v862, %v944
      %v959 = vmul.f32 %v863, %v944
      %v960 = vmul.f32 %v864, %v944
      %v961 = vadd.f32 %v945, 0.0
      %v962 = vadd.f32 %v946, 0.0
      %v963 = vadd.f32 %v947, 0.0
      %v964 = vadd.f32 %v948, 0.0
      %v965 = vadd.f32 %v949, 0.0
      %v966 = vadd.f32 %v950, 0.0
      %v967 = vadd.f32 %v951, 0.0
      %v968 = vadd.f32 %v952, 0.0
      %v969 = vadd.f32 %v953, 0.0
      %v970 = vadd.f32 %v954, 0.0
      %v971 = vadd.f32 %v955, 0.0
      %v972 = vadd.f32 %v956, 0.0
      %v973 = vadd.f32 %v957, 0.0
      %v974 = vadd.f32 %v958, 0.0
      %v975 = vadd.f32 %v959, 0.0
      %v976 = vadd.f32 %v960, 0.0
      %v977 = vperm.slane %v942, 1
      %v978 = vmul.f32 %v773, %v977
      %v979 = vmul.f32 %v774, %v977
      %v980 = vmul.f32 %v775, %v977
      %v981 = vmul.f32 %v776, %v977
      %v982 = vmul.f32 %v777, %v977
      %v983 = vmul.f32 %v778, %v977
      %v984 = vmul.f32 %v779, %v977
      %v985 = vmul.f32 %v780, %v977
      %v986 = vmul.f32 %v781, %v977
      %v987 = vmul.f32 %v782, %v977
      %v988 = vmul.f32 %v783, %v977
      %v989 = vmul.f32 %v784, %v977
      %v990 = vmul.f32 %v785, %v977
      %v991 = vmul.f32 %v786, %v977
      %v992 = vmul.f32 %v787, %v977
      %v993 = vmul.f32 %v788, %v977
      %v994 = vadd.f32 %v961, %v978
      %v995 = vadd.f32 %v962, %v979
      %v996 = vadd.f32 %v963, %v980
      %v997 = vadd.f32 %v964, %v981
      %v998 = vadd.f32 %v965, %v982
      %v999 = vadd.f32 %v966, %v983
      %v1000 = vadd.f32 %v967, %v984
      %v1001 = vadd.f32 %v968, %v985
      %v1002 = vadd.f32 %v969, %v986
      %v1003 = vadd.f32 %v970, %v987
      %v1004 = vadd.f32 %v971, %v988
      %v1005 = vadd.f32 %v972, %v989
      %v1006 = vadd.f32 %v973, %v990
      %v1007 = vadd.f32 %v974, %v991
      %v1008 = vadd.f32 %v975, %v992
      %v1009 = vadd.f32 %v976, %v993
      %v1010 = vperm.slane %v942, 2
      %v1011 = vmul.f32 %v922, %v1010
      %v1012 = vmul.f32 %v923, %v1010
      %v1013 = vmul.f32 %v924, %v1010
      %v1014 = vmul.f32 %v925, %v1010
      %v1015 = vmul.f32 %v926, %v1010
      %v1016 = vmul.f32 %v927, %v1010
      %v1017 = vmul.f32 %v928, %v1010
      %v1018 = vmul.f32 %v929, %v1010
      %v1019 = vmul.f32 %v930, %v1010
      %v1020 = vmul.f32 %v931, %v1010
      %v1021 = vmul.f32 %v932, %v1010
      %v1022 = vmul.f32 %v933, %v1010
      %v1023 = vmul.f32 %v934, %v1010
      %v1024 = vmul.f32 %v935, %v1010
      %v1025 = vmul.f32 %v936, %v1010
      %v1026 = vmul.f32 %v937, %v1010
      %v1027 = vadd.f32 %v994, %v1011
      %v1028 = vadd.f32 %v995, %v1012
      %v1029 = vadd.f32 %v996, %v1013
      %v1030 = vadd.f32 %v997, %v1014
      %v1031 = vadd.f32 %v998, %v1015
      %v1032 = vadd.f32 %v999, %v1016
      %v1033 = vadd.f32 %v1000, %v1017
      %v1034 = vadd.f32 %v1001, %v1018
      %v1035 = vadd.f32 %v1002, %v1019
      %v1036 = vadd.f32 %v1003, %v1020
      %v1037 = vadd.f32 %v1004, %v1021
      %v1038 = vadd.f32 %v1005, %v1022
      %v1039 = vadd.f32 %v1006, %v1023
      %v1040 = vadd.f32 %v1007, %v1024
      %v1041 = vadd.f32 %v1008, %v1025
      %v1042 = vadd.f32 %v1009, %v1026
      %v1043 = vperm.slane %v942, 3
      %v1044 = vmul.f32 %v851, %v1043
      %v1045 = vmul.f32 %v852, %v1043
      %v1046 = vmul.f32 %v853, %v1043
      %v1047 = vmul.f32 %v854, %v1043
      %v1048 = vmul.f32 %v855, %v1043
      %v1049 = vmul.f32 %v856, %v1043
      %v1050 = vmul.f32 %v857, %v1043
      %v1051 = vmul.f32 %v858, %v1043
      %v1052 = vmul.f32 %v859, %v1043
      %v1053 = vmul.f32 %v860, %v1043
      %v1054 = vmul.f32 %v861, %v1043
      %v1055 = vmul.f32 %v862, %v1043
      %v1056 = vmul.f32 %v863, %v1043
      %v1057 = vmul.f32 %v864, %v1043
      %v1058 = vmul.f32 %v865, %v1043
      %v1059 = vmul.f32 %v866, %v1043
      %v1060 = vadd.f32 %v1027, %v1044
      %v1061 = vadd.f32 %v1028, %v1045
      %v1062 = vadd.f32 %v1029, %v1046
      %v1063 = vadd.f32 %v1030, %v1047
      %v1064 = vadd.f32 %v1031, %v1048
      %v1065 = vadd.f32 %v1032, %v1049
      %v1066 = vadd.f32 %v1033, %v1050
      %v1067 = vadd.f32 %v1034, %v1051
      %v1068 = vadd.f32 %v1035, %v1052
      %v1069 = vadd.f32 %v1036, %v1053
      %v1070 = vadd.f32 %v1037, %v1054
      %v1071 = vadd.f32 %v1038, %v1055
      %v1072 = vadd.f32 %v1039, %v1056
      %v1073 = vadd.f32 %v1040, %v1057
      %v1074 = vadd.f32 %v1041, %v1058
      %v1075 = vadd.f32 %v1042, %v1059
      %v1076 = vperm.slane %v942, 4
      %v1077 = vmul.f32 %v775, %v1076
      %v1078 = vmul.f32 %v776, %v1076
      %v1079 = vmul.f32 %v777, %v1076
      %v1080 = vmul.f32 %v778, %v1076
      %v1081 = vmul.f32 %v779, %v1076
      %v1082 = vmul.f32 %v780, %v1076
      %v1083 = vmul.f32 %v781, %v1076
      %v1084 = vmul.f32 %v782, %v1076
      %v1085 = vmul.f32 %v783, %v1076
      %v1086 = vmul.f32 %v784, %v1076
      %v1087 = vmul.f32 %v785, %v1076
      %v1088 = vmul.f32 %v786, %v1076
      %v1089 = vmul.f32 %v787, %v1076
      %v1090 = vmul.f32 %v788, %v1076
      %v1091 = vmul.f32 %v789, %v1076
      %v1092 = vmul.f32 %v790, %v1076
      %v1093 = vadd.f32 %v1060, %v1077
      %v1094 = vadd.f32 %v1061, %v1078
      %v1095 = vadd.f32 %v1062, %v1079
      %v1096 = vadd.f32 %v1063, %v1080
      %v1097 = vadd.f32 %v1064, %v1081
      %v1098 = vadd.f32 %v1065, %v1082
      %v1099 = vadd.f32 %v1066, %v1083
      %v1100 = vadd.f32 %v1067, %v1084
      %v1101 = vadd.f32 %v1068, %v1085
      %v1102 = vadd.f32 %v1069, %v1086
      %v1103 = vadd.f32 %v1070, %v1087
      %v1104 = vadd.f32 %v1071, %v1088
      %v1105 = vadd.f32 %v1072, %v1089
      %v1106 = vadd.f32 %v1073, %v1090
      %v1107 = vadd.f32 %v1074, %v1091
      %v1108 = vadd.f32 %v1075, %v1092
      %v1109 = vperm.slane %v942, 5
      %v1110 = vmul.f32 %v924, %v1109
      %v1111 = vmul.f32 %v925, %v1109
      %v1112 = vmul.f32 %v926, %v1109
      %v1113 = vmul.f32 %v927, %v1109
      %v1114 = vmul.f32 %v928, %v1109
      %v1115 = vmul.f32 %v929, %v1109
      %v1116 = vmul.f32 %v930, %v1109
      %v1117 = vmul.f32 %v931, %v1109
      %v1118 = vmul.f32 %v932, %v1109
      %v1119 = vmul.f32 %v933, %v1109
      %v1120 = vmul.f32 %v934, %v1109
      %v1121 = vmul.f32 %v935, %v1109
      %v1122 = vmul.f32 %v936, %v1109
      %v1123 = vmul.f32 %v937, %v1109
      %v1124 = vmul.f32 %v938, %v1109
      %v1125 = vmul.f32 %v939, %v1109
      %v1126 = vadd.f32 %v1093, %v1110
      %v1127 = vadd.f32 %v1094, %v1111
      %v1128 = vadd.f32 %v1095, %v1112
      %v1129 = vadd.f32 %v1096, %v1113
      %v1130 = vadd.f32 %v1097, %v1114
      %v1131 = vadd.f32 %v1098, %v1115
      %v1132 = vadd.f32 %v1099, %v1116
      %v1133 = vadd.f32 %v1100, %v1117
      %v1134 = vadd.f32 %v1101, %v1118
      %v1135 = vadd.f32 %v1102, %v1119
      %v1136 = vadd.f32 %v1103, %v1120
      %v1137 = vadd.f32 %v1104, %v1121
      %v1138 = vadd.f32 %v1105, %v1122
      %v1139 = vadd.f32 %v1106, %v1123
      %v1140 = vadd.f32 %v1107, %v1124
      %v1141 = vadd.f32 %v1108, %v1125
      %v1142 = vperm.slane %v942, 6
      %v1143 = vmul.f32 %v853, %v1142
      %v1144 = vmul.f32 %v854, %v1142
      %v1145 = vmul.f32 %v855, %v1142
      %v1146 = vmul.f32 %v856, %v1142
      %v1147 = vmul.f32 %v857, %v1142
      %v1148 = vmul.f32 %v858, %v1142
      %v1149 = vmul.f32 %v859, %v1142
      %v1150 = vmul.f32 %v860, %v1142
      %v1151 = vmul.f32 %v861, %v1142
      %v1152 = vmul.f32 %v862, %v1142
      %v1153 = vmul.f32 %v863, %v1142
      %v1154 = vmul.f32 %v864, %v1142
      %v1155 = vmul.f32 %v865, %v1142
      %v1156 = vmul.f32 %v866, %v1142
      %v1157 = vmul.f32 %v867, %v1142
      %v1158 = vmul.f32 %v868, %v1142
      %v1159 = vadd.f32 %v1126, %v1143
      %v1160 = vadd.f32 %v1127, %v1144
      %v1161 = vadd.f32 %v1128, %v1145
      %v1162 = vadd.f32 %v1129, %v1146
      %v1163 = vadd.f32 %v1130, %v1147
      %v1164 = vadd.f32 %v1131, %v1148
      %v1165 = vadd.f32 %v1132, %v1149
      %v1166 = vadd.f32 %v1133, %v1150
      %v1167 = vadd.f32 %v1134, %v1151
      %v1168 = vadd.f32 %v1135, %v1152
      %v1169 = vadd.f32 %v1136, %v1153
      %v1170 = vadd.f32 %v1137, %v1154
      %v1171 = vadd.f32 %v1138, %v1155
      %v1172 = vadd.f32 %v1139, %v1156
      %v1173 = vadd.f32 %v1140, %v1157
      %v1174 = vadd.f32 %v1141, %v1158
      %v1175 = vperm.slane %v942, 7
      %v1176 = vmul.f32 %v777, %v1175
      %v1177 = vmul.f32 %v778, %v1175
      %v1178 = vmul.f32 %v779, %v1175
      %v1179 = vmul.f32 %v780, %v1175
      %v1180 = vmul.f32 %v781, %v1175
      %v1181 = vmul.f32 %v782, %v1175
      %v1182 = vmul.f32 %v783, %v1175
      %v1183 = vmul.f32 %v784, %v1175
      %v1184 = vmul.f32 %v785, %v1175
      %v1185 = vmul.f32 %v786, %v1175
      %v1186 = vmul.f32 %v787, %v1175
      %v1187 = vmul.f32 %v788, %v1175
      %v1188 = vmul.f32 %v789, %v1175
      %v1189 = vmul.f32 %v790, %v1175
      %v1190 = vmul.f32 %v791, %v1175
      %v1191 = vmul.f32 %v792, %v1175
      %v1192 = vadd.f32 %v1159, %v1176
      %v1193 = vadd.f32 %v1160, %v1177
      %v1194 = vadd.f32 %v1161, %v1178
      %v1195 = vadd.f32 %v1162, %v1179
      %v1196 = vadd.f32 %v1163, %v1180
      %v1197 = vadd.f32 %v1164, %v1181
      %v1198 = vadd.f32 %v1165, %v1182
      %v1199 = vadd.f32 %v1166, %v1183
      %v1200 = vadd.f32 %v1167, %v1184
      %v1201 = vadd.f32 %v1168, %v1185
      %v1202 = vadd.f32 %v1169, %v1186
      %v1203 = vadd.f32 %v1170, %v1187
      %v1204 = vadd.f32 %v1171, %v1188
      %v1205 = vadd.f32 %v1172, %v1189
      %v1206 = vadd.f32 %v1173, %v1190
      %v1207 = vadd.f32 %v1174, %v1191
      %v1208 = vperm.slane %v943, 0
      %v1209 = vmul.f32 %v926, %v1208
      %v1210 = vmul.f32 %v927, %v1208
      %v1211 = vmul.f32 %v928, %v1208
      %v1212 = vmul.f32 %v929, %v1208
      %v1213 = vmul.f32 %v930, %v1208
      %v1214 = vmul.f32 %v931, %v1208
      %v1215 = vmul.f32 %v932, %v1208
      %v1216 = vmul.f32 %v933, %v1208
      %v1217 = vmul.f32 %v934, %v1208
      %v1218 = vmul.f32 %v935, %v1208
      %v1219 = vmul.f32 %v936, %v1208
      %v1220 = vmul.f32 %v937, %v1208
      %v1221 = vmul.f32 %v938, %v1208
      %v1222 = vmul.f32 %v939, %v1208
      %v1223 = vmul.f32 %v940, %v1208
      %v1224 = vmul.f32 %v941, %v1208
      %v1225 = vadd.f32 %v1192, %v1209
      %v1226 = vadd.f32 %v1193, %v1210
      %v1227 = vadd.f32 %v1194, %v1211
      %v1228 = vadd.f32 %v1195, %v1212
      %v1229 = vadd.f32 %v1196, %v1213
      %v1230 = vadd.f32 %v1197, %v1214
      %v1231 = vadd.f32 %v1198, %v1215
      %v1232 = vadd.f32 %v1199, %v1216
      %v1233 = vadd.f32 %v1200, %v1217
      %v1234 = vadd.f32 %v1201, %v1218
      %v1235 = vadd.f32 %v1202, %v1219
      %v1236 = vadd.f32 %v1203, %v1220
      %v1237 = vadd.f32 %v1204, %v1221
      %v1238 = vadd.f32 %v1205, %v1222
      %v1239 = vadd.f32 %v1206, %v1223
      %v1240 = vadd.f32 %v1207, %v1224
      %v1241 = vld [vmem:[%s6] sm:$0x1]
      %v1243 = vperm.slane %v1241, 0
      %v1245 = vadd.f32 %v1225, %v1243
      %v1246 = vadd.f32 %v1226, %v1243
      %v1247 = vadd.f32 %v1227, %v1243
      %v1248 = vadd.f32 %v1228, %v1243
      %v1249 = vadd.f32 %v1229, %v1243
      %v1250 = vadd.f32 %v1230, %v1243
      %v1251 = vadd.f32 %v1231, %v1243
      %v1252 = vadd.f32 %v1232, %v1243
      %v1253 = vadd.f32 %v1233, %v1243
      %v1254 = vadd.f32 %v1234, %v1243
      %v1255 = vadd.f32 %v1235, %v1243
      %v1256 = vadd.f32 %v1236, %v1243
      %v1257 = vadd.f32 %v1237, %v1243
      %v1258 = vadd.f32 %v1238, %v1243
      %v1259 = vadd.f32 %v1239, %v1243
      %v1260 = vadd.f32 %v1240, %v1243
      %v1261 = vmax.f32 %v1245, 0.0
      %v1262 = vmax.f32 %v1246, 0.0
      %v1263 = vmax.f32 %v1247, 0.0
      %v1264 = vmax.f32 %v1248, 0.0
      %v1265 = vmax.f32 %v1249, 0.0
      %v1266 = vmax.f32 %v1250, 0.0
      %v1267 = vmax.f32 %v1251, 0.0
      %v1268 = vmax.f32 %v1252, 0.0
      %v1269 = vmax.f32 %v1253, 0.0
      %v1270 = vmax.f32 %v1254, 0.0
      %v1271 = vmax.f32 %v1255, 0.0
      %v1272 = vmax.f32 %v1256, 0.0
      %v1273 = vmax.f32 %v1257, 0.0
      %v1274 = vmax.f32 %v1258, 0.0
      %v1275 = vmax.f32 %v1259, 0.0
      %v1276 = vmax.f32 %v1260, 0.0
      %v1277 = vmin.f32 %v1261, 6.0
      %v1278 = vmin.f32 %v1262, 6.0
      %v1279 = vmin.f32 %v1263, 6.0
      %v1280 = vmin.f32 %v1264, 6.0
      %v1281 = vmin.f32 %v1265, 6.0
      %v1282 = vmin.f32 %v1266, 6.0
      %v1283 = vmin.f32 %v1267, 6.0
      %v1284 = vmin.f32 %v1268, 6.0
      %v1285 = vmin.f32 %v1269, 6.0
      %v1286 = vmin.f32 %v1270, 6.0
      %v1287 = vmin.f32 %v1271, 6.0
      %v1288 = vmin.f32 %v1272, 6.0
      %v1289 = vmin.f32 %v1273, 6.0
      %v1290 = vmin.f32 %v1274, 6.0
      %v1291 = vmin.f32 %v1275, 6.0
      %v1292 = vmin.f32 %v1276, 6.0
      %v1293 = vpack.c.bf16 %v1278, %v1277
      %v1294 = vpack.c.bf16 %v1280, %v1279
      %v1295 = vpack.c.bf16 %v1282, %v1281
      %v1296 = vpack.c.bf16 %v1284, %v1283
      %v1297 = vpack.c.bf16 %v1286, %v1285
      %v1298 = vpack.c.bf16 %v1288, %v1287
      %v1299 = vpack.c.bf16 %v1290, %v1289
      %v1300 = vpack.c.bf16 %v1292, %v1291
      %v1301 = vld [vmem:[%s7] sm:$0xf]
      %v1302 = vld [vmem:[%s8] sm:$0x1]
      %v1304 = vperm.slane %v1302, 0
      %vm1306 = vcmask 64512
      %v1308 = vsel %vm1306, %v1293, 0
      %v1311 = vsel %vm1306, %v1294, 0
      %v1314 = vsel %vm1306, %v1295, 0
      %v1317 = vsel %vm1306, %v1296, 0
      %v1320 = vsel %vm1306, %v1297, 0
      %v1323 = vsel %vm1306, %v1298, 0
      %v1326 = vsel %vm1306, %v1299, 0
      %v1329 = vsel %vm1306, %v1300, 0
      %vm1331 = vcmask 1043456
      %v1333 = vsel %vm1331, %v1301, 0
      %1335 = vmatpush.bf16.msra.mxu0 0
      %1336 = vmatpush.bf16.msra.mxu0 0
      %1337 = vmatpush.bf16.msra.mxu0 0
      %1338 = vmatpush.bf16.msra.mxu0 0
      %1339 = vmatpush.bf16.msra.mxu0 0
      %1340 = vmatpush.bf16.msra.mxu0 0
      %1341 = vmatpush.bf16.msra.mxu0 0
      %1342 = vmatpush.bf16.msra.mxu0 %v1333
      %1343 = vmatmul.bf16.gmra.mxu0 %v1308
      %v1344 = vpop.f32.mrf.mxu0
      %v1345 = vadd.f32 %v1304, %v1344
      %v1346 = vpop.f32.mrf.mxu0
      %v1347 = vadd.f32 %v1304, %v1346
      %1348 = vmatmul.bf16.gmra.mxu0 %v1311
      %v1349 = vpop.f32.mrf.mxu0
      %v1350 = vadd.f32 %v1304, %v1349
      %v1351 = vpop.f32.mrf.mxu0
      %v1352 = vadd.f32 %v1304, %v1351
      %1353 = vmatmul.bf16.gmra.mxu0 %v1314
      %v1354 = vpop.f32.mrf.mxu0
      %v1355 = vadd.f32 %v1304, %v1354
      %v1356 = vpop.f32.mrf.mxu0
      %v1357 = vadd.f32 %v1304, %v1356
      %1358 = vmatmul.bf16.gmra.mxu0 %v1317
      %v1359 = vpop.f32.mrf.mxu0
      %v1360 = vadd.f32 %v1304, %v1359
      %v1361 = vpop.f32.mrf.mxu0
      %v1362 = vadd.f32 %v1304, %v1361
      %1363 = vmatmul.bf16.gmra.mxu0 %v1320
      %v1364 = vpop.f32.mrf.mxu0
      %v1365 = vadd.f32 %v1304, %v1364
      %v1366 = vpop.f32.mrf.mxu0
      %v1367 = vadd.f32 %v1304, %v1366
      %1368 = vmatmul.bf16.gmra.mxu0 %v1323
      %v1369 = vpop.f32.mrf.mxu0
      %v1370 = vadd.f32 %v1304, %v1369
      %v1371 = vpop.f32.mrf.mxu0
      %v1372 = vadd.f32 %v1304, %v1371
      %1373 = vmatmul.bf16.gmra.mxu0 %v1326
      %v1374 = vpop.f32.mrf.mxu0
      %v1375 = vadd.f32 %v1304, %v1374
      %v1376 = vpop.f32.mrf.mxu0
      %v1377 = vadd.f32 %v1304, %v1376
      %1378 = vmatmul.bf16.gmra.mxu0 %v1329
      %v1379 = vpop.f32.mrf.mxu0
      %v1380 = vadd.f32 %v1304, %v1379
      %v1381 = vpop.f32.mrf.mxu0
      %v1382 = vadd.f32 %v1304, %v1381
      %1383 = vdwg.mxu0
      %v1384 = vunpack.c.l.bf16 %v502
      %v1385 = vunpack.c.l.bf16 %v503
      %v1386 = vunpack.c.l.bf16 %v504
      %v1387 = vunpack.c.l.bf16 %v505
      %v1388 = vunpack.c.l.bf16 %v506
      %v1389 = vunpack.c.l.bf16 %v507
      %v1390 = vunpack.c.l.bf16 %v508
      %v1391 = vunpack.c.l.bf16 %v509
      %v1392 = vunpack.c.l.bf16 %v510
      %v1393 = vunpack.c.l.bf16 %v511
      %v1394 = vunpack.c.l.bf16 %v512
      %v1395 = vunpack.c.l.bf16 %v513
      %v1396 = vunpack.c.l.bf16 %v514
      %v1397 = vunpack.c.l.bf16 %v515
      %v1398 = vunpack.c.l.bf16 %v516
      %v1399 = vunpack.c.l.bf16 %v517
      %v1400 = vadd.f32 %v1345, %v1384
      %v1401 = vadd.f32 %v1347, %v1385
      %v1402 = vadd.f32 %v1350, %v1386
      %v1403 = vadd.f32 %v1352, %v1387
      %v1404 = vadd.f32 %v1355, %v1388
      %v1405 = vadd.f32 %v1357, %v1389
      %v1406 = vadd.f32 %v1360, %v1390
      %v1407 = vadd.f32 %v1362, %v1391
      %v1408 = vadd.f32 %v1365, %v1392
      %v1409 = vadd.f32 %v1367, %v1393
      %v1410 = vadd.f32 %v1370, %v1394
      %v1411 = vadd.f32 %v1372, %v1395
      %v1412 = vadd.f32 %v1375, %v1396
      %v1413 = vadd.f32 %v1377, %v1397
      %v1414 = vadd.f32 %v1380, %v1398
      %v1415 = vadd.f32 %v1382, %v1399
      %v1416 = vpack.c.bf16 %v1400, %v1400
      %v1417 = vpack.c.bf16 %v1401, %v1401
      %v1418 = vpack.c.bf16 %v1402, %v1402
      %v1419 = vpack.c.bf16 %v1403, %v1403
      %v1420 = vpack.c.bf16 %v1404, %v1404
      %v1421 = vpack.c.bf16 %v1405, %v1405
      %v1422 = vpack.c.bf16 %v1406, %v1406
      %v1423 = vpack.c.bf16 %v1407, %v1407
      %v1424 = vpack.c.bf16 %v1408, %v1408
      %v1425 = vpack.c.bf16 %v1409, %v1409
      %v1426 = vpack.c.bf16 %v1410, %v1410
      %v1427 = vpack.c.bf16 %v1411, %v1411
      %v1428 = vpack.c.bf16 %v1412, %v1412
      %v1429 = vpack.c.bf16 %v1413, %v1413
      %v1430 = vpack.c.bf16 %v1414, %v1414
      %v1431 = vpack.c.bf16 %v1415, %v1415
      %vm1432 = vcmask 27648
      %1433 = vst.msk [vmem:[%s499] sm:$0xf] %vm1432, %v1416
      %1434 = vst.msk [vmem:[%s499 + $0x4] sm:$0xf] %vm1432, %v1417
      %1435 = vst.msk [vmem:[%s499 + $0x8] sm:$0xf] %vm1432, %v1418
      %1436 = vst.msk [vmem:[%s499 + $0xc] sm:$0xf] %vm1432, %v1419
      %1437 = vst.msk [vmem:[%s499 + $0x10] sm:$0xf] %vm1432, %v1420
      %1438 = vst.msk [vmem:[%s499 + $0x14] sm:$0xf] %vm1432, %v1421
      %1439 = vst.msk [vmem:[%s499 + $0x18] sm:$0xf] %vm1432, %v1422
      %1440 = vst.msk [vmem:[%s499 + $0x1c] sm:$0xf] %vm1432, %v1423
      %1441 = vst.msk [vmem:[%s499 + $0x20] sm:$0xf] %vm1432, %v1424
      %1442 = vst.msk [vmem:[%s499 + $0x24] sm:$0xf] %vm1432, %v1425
      %1443 = vst.msk [vmem:[%s499 + $0x28] sm:$0xf] %vm1432, %v1426
      %1444 = vst.msk [vmem:[%s499 + $0x2c] sm:$0xf] %vm1432, %v1427
      %1445 = vst.msk [vmem:[%s499 + $0x30] sm:$0xf] %vm1432, %v1428
      %1446 = vst.msk [vmem:[%s499 + $0x34] sm:$0xf] %vm1432, %v1429
      %1447 = vst.msk [vmem:[%s499 + $0x38] sm:$0xf] %vm1432, %v1430
      %1448 = vst.msk [vmem:[%s499 + $0x3c] sm:$0xf] %vm1432, %v1431
      %s1449 = smul.u32 8, %s25
      %p1450 = scmp.lt.s32.totalorder %s24, 1
      %s1451 = scalar_select %p1450, %s24, 1
      %p1452 = scmp.lt.s32.totalorder %s1449, 15
      %s1453 = scalar_select %p1452, %s1449, 15
      %s1454 = smul.addr %s1453, 2
      %s1455 = smul.addr %s1451, 32
      %s1456 = sadd.s32 %s1454, %s1455
      %s1457 = smul.addr %s1456, 4
      %s1458 = scalar_lea.vmem %s9, %s1457
      // Predicated region
      $region57: #{tpu_custom_call.1} parent=55 // pred_check
        %p1459 = pneg %p278
      $region58: #{tpu_custom_call.1} parent=55 // pred_check_branch
        %1461 = sbr.rel (%p1459) target = $region60
      $region59: #{tpu_custom_call.1} parent=55 // pred_region
        %s1462 = smul.u32 8, %s25
      $region60: #{tpu_custom_call.1} parent=55 // pred_fallthru
        _
    $region56: #{tpu_custom_call.1} parent=5 // pred_fallthru
      _
    %p1463 = scmp.le.s32.totalorder 2, %s15
    // Predicated region
    $region61: #{tpu_custom_call.1} parent=5 // pred_check
      %p1464 = pneg %p1463
    $region62: #{tpu_custom_call.1} parent=5 // pred_check_branch
      %1466 = sbr.rel (%p1464) target = $region64
    $region63: #{tpu_custom_call.1} parent=5 // pred_region
      %s1467 = ssub.s32 %s15, 2
      // Predicated region
      $region65: #{tpu_custom_call.1} parent=63 // pred_check
        %p1468 = pneg %p284
      $region66: #{tpu_custom_call.1} parent=63 // pred_check_branch
        %1470 = sbr.rel (%p1468) target = $region68
      $region67: #{tpu_custom_call.1} parent=63 // pred_region
        %s1471 = smul.u32 8, %s27
        %p1472 = scmp.lt.s32.totalorder %s26, 1
        %s1473 = scalar_select %p1472, %s26, 1
        %p1474 = scmp.lt.s32.totalorder %s1471, 15
        %s1475 = scalar_select %p1474, %s1471, 15
        %s1476 = smul.addr %s1475, 2
        %s1477 = smul.addr %s1473, 32
        %s1478 = sadd.s32 %s1476, %s1477
        %s1479 = smul.addr %s1478, 4
        %s1480 = scalar_lea.vmem %s9, %s1479
      $region68: #{tpu_custom_call.1} parent=63 // pred_fallthru
        _
    $region64: #{tpu_custom_call.1} parent=5 // pred_fallthru
      _
  $region6: #{tpu_custom_call.1} parent=0 // loop_footer
    %s19 = sadd.s32 1, %s15
  $region7: #{tpu_custom_call.1} parent=0 // loop_footer_branch
    %14 = sbr.rel target = $region3
  $region8: #{tpu_custom_call.1} parent=0 // loop_exit
    _

</llo_original>
